<compile_context>
chip_gen: v7x
topology: tpu7x:2x2x1
jax: 0.10.0
libtpu: 0.0.40
codegen_flags: <defaults>
</compile_context>

<pallas_src>
from functools import partial

import jax
import jax.numpy as jnp
from jax.experimental import pallas as pl
from jax.experimental.pallas import tpu as pltpu


# ----------------------------------------------------------------------------
# Fixed architecture sizes (from the chosen op_list)
# ----------------------------------------------------------------------------
IMG = 16    # input spatial size (H = W)
CIN = 4     # input channels
C1 = 8      # conv1 / SRConv input channels
POOL = 8    # spatial size after MaxPool (SRConv operates at 8x8)
C2 = 16     # SRConv output channels
NC = 10     # classes
NB = 8      # images per grid step (sublane-stacked batch tile)


# ----------------------------------------------------------------------------
# Fused forward kernel (one grid step == NB batch elements)
# ----------------------------------------------------------------------------
def fused_forward_kernel(x_ref,        # (NB, 16, 64)   images, (H, W*CIN) lane-folded
                         w1_ref,       # (3, 64, 128)   conv1 banded tap mats (bf16)
                         b1_ref,       # (1, 128)       conv1 bias, tiled over W
                         bn1s_ref,     # (1, 128)       bn1 scale, tiled over W
                         bn1t_ref,     # (1, 128)       bn1 shift, tiled over W
                         csel_ref,     # (120, 64)      maxpool even-lane-group selector
                         srt_ref,      # (1, 64)        SRConv.bn shift/scale, tiled
                         w2_ref,       # (3, 64, 128)   SRConv.conv banded taps * srbn scale (bf16)
                         b2_ref,       # (1, 128)       SRConv.conv bias, tiled
                         rexp_ref,     # (64, 128)      residual pad(8->16) * bnsc scale
                         rshift_ref,   # (1, 128)       bnsc shift, tiled
                         wfc_ref,      # (128, 10)      FC weights tiled over W, /64
                         bfc_ref,      # (1, 10)        FC bias
                         o_ref,        # (NB, 10)       logits block
                         pad1_ref,     # VMEM (NB, 18, 64) row-padded conv1 input
                         pad2_ref,     # VMEM (NB, 10, 64) row-padded conv2 input
                         y1_ref,       # VMEM (NB*16, 128) conv1 output staging
                         *, nb):
    f32 = jnp.float32
    bf16 = jnp.bfloat16

    # -- stage 0: vertical zero padding only (horizontal 'same' padding is folded
    #    into the banded tap matrices).  Zero just the two border rows per image;
    #    the interior is fully overwritten by the image block every step.
    zrow1 = jnp.zeros((nb, 1, IMG * CIN), f32)
    pad1_ref[:, 0:1, :] = zrow1
    pad1_ref[:, IMG + 1:IMG + 2, :] = zrow1
    pad1_ref[:, 1:IMG + 1, :] = x_ref[...]

    # -- stage 1: Conv(4->8, 3x3, 'same', s1) as 3 banded MXU dots (one per kernel
    #    row), bf16 operands / f32 accumulation; epilogue = bias + ReLU + eval BN.
    acc = None
    for i in range(3):
        xi = pad1_ref[:, i:i + IMG, :].reshape(nb * IMG, IMG * CIN).astype(bf16)
        d = jnp.dot(xi, w1_ref[i], preferred_element_type=f32)
        acc = d if acc is None else acc + d
    y1 = jnp.maximum(acc + b1_ref[...], 0.0) * bn1s_ref[...] + bn1t_ref[...]   # (nb*16, 128)

    # -- stage 2: MaxPool(2,2).  Rows: stage y1 in VMEM and take a stride-2 sublane
    #    pair max (no selector matmul).  Columns: 8-lane shifted max + one 0/1
    #    compaction dot (keeps even channel groups, per-image layout preserved).
    y1_ref[...] = y1
    hp = jnp.maximum(y1_ref[pl.ds(0, nb * POOL, stride=2), :],
                     y1_ref[pl.ds(1, nb * POOL, stride=2), :])                  # (nb*8, 128)
    wm = jnp.maximum(hp[:, 0:(2 * POOL - 1) * C1], hp[:, C1:2 * POOL * C1])     # (nb*8, 120)
    pooled = jnp.dot(wm, csel_ref[...], preferred_element_type=f32)             # (nb*8, 64)

    # -- stage 3: SRConv input.  The srbn per-channel scale is folded into the conv2
    #    tap matrices (exact, zero-preserving for the conv's zero padding); only the
    #    shift (beta-mean*scale)/scale is added to the interior.  Border rows = 0.
    zrow2 = jnp.zeros((nb, 1, POOL * C1), f32)
    pad2_ref[:, 0:1, :] = zrow2
    pad2_ref[:, POOL + 1:POOL + 2, :] = zrow2
    pad2_ref[:, 1:POOL + 1, :] = pooled.reshape(nb, POOL, POOL * C1) + srt_ref[...]

    # -- stage 4: SRConv.conv (8->16, 3x3, 'same', s1) + bias + ReLU, same scheme.
    acc2 = None
    for i in range(3):
        xi = pad2_ref[:, i:i + POOL, :].reshape(nb * POOL, POOL * C1).astype(bf16)
        d = jnp.dot(xi, w2_ref[i], preferred_element_type=f32)
        acc2 = d if acc2 is None else acc2 + d
    h2 = jnp.maximum(acc2 + b2_ref[...], 0.0)                                   # (nb*8, 128)

    # -- stage 5: residual = bnsc(channel_pad(pooled)): the 8->16 zero-pad and the
    #    per-channel bnsc scale are one block-scatter matmul, the shift one add.
    #    Then the following Clip op (ReLU6).
    res = jnp.dot(pooled, rexp_ref[...], preferred_element_type=f32) + rshift_ref[...]
    y = jnp.minimum(jnp.maximum(h2 + res, 0.0), 6.0)                            # (nb*8, 128)

    # -- stage 6: AvgPool(2,2) + adaptive_avg_pool2d((1,1)) == global spatial mean;
    #    the W/channel unfold and the 1/64 factor are pre-folded into the tiled FC
    #    weights.  Dropout(p=0.2) is identity in eval mode.  One (NB,10) store.
    rowsum = jnp.sum(y.reshape(nb, POOL, POOL * C2), axis=1)                    # (nb, 128)
    o_ref[...] = jnp.dot(rowsum, wfc_ref[...], preferred_element_type=f32) + bfc_ref[...]


# ----------------------------------------------------------------------------
# Parameter preparation (plain JAX, done once outside the kernel)
# ----------------------------------------------------------------------------
def _bn_affine(gamma, beta, mean, var, eps=1e-5):
    scale = gamma / jnp.sqrt(var + eps)
    return scale, beta - mean * scale


def _banded_taps(w_hwio, width, in_scale=None):
    """(3,3,Cin,Cout) -> (3, width*Cin, width*Cout) banded per-kernel-row matrices:
    taps[i, wi*Cin+c, wo*Cout+o] = w[i, wi-wo+1, c, o]  for |wi-wo| <= 1.
    Band truncation at the edges implements the 'same' zero padding along W, so the
    conv operand needs no lane padding.  Optional per-input-channel scale folds a
    preceding eval-mode BatchNorm scale into the weights (zero-preserving)."""
    kh, kw, cin, cout = w_hwio.shape
    w = w_hwio.astype(jnp.float32)
    if in_scale is not None:
        w = w * in_scale.reshape(1, 1, cin, 1)
    idx = jnp.arange(width)
    taps = []
    for i in range(kh):
        m = jnp.zeros((width * cin, width * cout), jnp.float32)
        for j in range(kw):
            sel = (idx[:, None] - idx[None, :] == (j - 1)).astype(jnp.float32)   # [w_in, w_out]
            m = m + jnp.einsum('ab,co->acbo', sel, w[i, j]).reshape(width * cin, width * cout)
        taps.append(m)
    return jnp.stack(taps, axis=0)


def pack_params(p):
    """Fold BN affines / pooling selectors / FC tiling into kernel-ready arrays."""
    bn1_s, bn1_t = _bn_affine(p["bn1_gamma"], p["bn1_beta"], p["bn1_mean"], p["bn1_var"])
    sr_s, sr_t = _bn_affine(p["srbn_gamma"], p["srbn_beta"], p["srbn_mean"], p["srbn_var"])
    sc_s, sc_t = _bn_affine(p["bnsc_gamma"], p["bnsc_beta"], p["bnsc_mean"], p["bnsc_var"])

    # MaxPool width-compaction selector: keep even 8-lane channel groups.
    rows = (2 * C1 * jnp.arange(POOL)[:, None] + jnp.arange(C1)[None, :]).reshape(-1)
    cols = (C1 * jnp.arange(POOL)[:, None] + jnp.arange(C1)[None, :]).reshape(-1)
    csel = jnp.zeros(((2 * POOL - 1) * C1, POOL * C1), jnp.float32)
    csel = csel.at[rows, cols].set(1.0)

    # Residual channel pad (8->16) combined with the bnsc per-channel scale.
    blk = jnp.concatenate([jnp.diag(sc_s[:C1]), jnp.zeros((C1, C2 - C1), jnp.float32)],
                          axis=1)                                                # (8, 16)
    rexp = jnp.einsum('wv,co->wcvo', jnp.eye(POOL, dtype=jnp.float32),
                      blk).reshape(POOL * C1, POOL * C2)                         # (64, 128)

    return dict(
        # bf16 conv tap matrices -> single-pass MXU matmuls (f32 accumulation in-kernel).
        w1=_banded_taps(p["conv1_w"], IMG).astype(jnp.bfloat16),
        b1=jnp.tile(p["conv1_b"], IMG).reshape(1, IMG * C1),
        bn1s=jnp.tile(bn1_s, IMG).reshape(1, IMG * C1),
        bn1t=jnp.tile(bn1_t, IMG).reshape(1, IMG * C1),
        csel=csel,
        # srbn scale folded into w2; the interior shift becomes srt/srs (exact).
        srt=jnp.tile(sr_t / sr_s, POOL).reshape(1, POOL * C1),
        w2=_banded_taps(p["sr_conv_w"], POOL, in_scale=sr_s).astype(jnp.bfloat16),
        b2=jnp.tile(p["sr_conv_b"], POOL).reshape(1, POOL * C2),
        rexp=rexp,
        rshift=jnp.tile(sc_t, POOL).reshape(1, POOL * C2),
        wfc=jnp.tile(p["fc_w"], (POOL, 1)) / float(POOL * POOL),                 # (128, NC)
        bfc=p["fc_b"].reshape(1, NC),
    )


# ----------------------------------------------------------------------------
# Forward pass (single fused pallas_call, NB images per grid step)
# ----------------------------------------------------------------------------
@partial(jax.jit, static_argnames=("nb",))
def plain_network_forward(packed, x_nchw, nb=NB):
    n = x_nchw.shape[0]
    # NCHW -> NHWC -> (N, H, W*C) lane-folded layout (metadata-only reshape).
    x = jnp.transpose(x_nchw, (0, 2, 3, 1)).astype(jnp.float32).reshape(n, IMG, IMG * CIN)
    n_pad = -(-n // nb) * nb
    if n_pad != n:
        x = jnp.pad(x, ((0, n_pad - n), (0, 0), (0, 0)))

    def whole(a):
        nd = a.ndim
        return pl.BlockSpec(a.shape, lambda i, nd=nd: (0,) * nd)

    consts = (packed["w1"], packed["b1"], packed["bn1s"], packed["bn1t"],
              packed["csel"], packed["srt"], packed["w2"], packed["b2"],
              packed["rexp"], packed["rshift"], packed["wfc"], packed["bfc"])

    out = pl.pallas_call(
        partial(fused_forward_kernel, nb=nb),
        out_shape=jax.ShapeDtypeStruct((n_pad, NC), jnp.float32),
        grid=(n_pad // nb,),
        in_specs=[pl.BlockSpec((nb, IMG, IMG * CIN), lambda i: (i, 0, 0))]
                 + [whole(a) for a in consts],
        out_specs=pl.BlockSpec((nb, NC), lambda i: (i, 0)),
        scratch_shapes=[pltpu.VMEM((nb, IMG + 2, IMG * CIN), jnp.float32),
                        pltpu.VMEM((nb, POOL + 2, POOL * C1), jnp.float32),
                        pltpu.VMEM((nb * IMG, IMG * C1), jnp.float32)],
        compiler_params=pltpu.CompilerParams(dimension_semantics=("parallel",)),
    )(x, *consts)
    return out[:n]


# ----------------------------------------------------------------------------
# Raw parameters (PyTorch-style init, but with non-trivial BN stats and biases so
# the self-test actually exercises BN folding and layout plumbing)
# ----------------------------------------------------------------------------
def init_params(key, num_classes=NC):
    ks = jax.random.split(key, 9)

    def kaiming_out(k, kh, kw, cin, cout):
        fan_out = kh * kw * cout
        return jax.random.normal(k, (kh, kw, cin, cout), jnp.float32) * jnp.sqrt(2.0 / fan_out)

    def bn_stats(k, c):
        k1, k2, k3, k4 = jax.random.split(k, 4)
        gamma = 1.0 + 0.1 * jax.random.normal(k1, (c,), jnp.float32)
        beta = 0.1 * jax.random.normal(k2, (c,), jnp.float32)
        mean = 0.2 * jax.random.normal(k3, (c,), jnp.float32)
        var = jax.random.uniform(k4, (c,), jnp.float32, minval=0.5, maxval=1.5)
        return gamma, beta, mean, var

    p = {}
    p["conv1_w"] = kaiming_out(ks[0], 3, 3, CIN, C1)
    p["conv1_b"] = 0.05 * jax.random.normal(ks[1], (C1,), jnp.float32)
    p["bn1_gamma"], p["bn1_beta"], p["bn1_mean"], p["bn1_var"] = bn_stats(ks[2], C1)
    p["srbn_gamma"], p["srbn_beta"], p["srbn_mean"], p["srbn_var"] = bn_stats(ks[3], C1)
    p["sr_conv_w"] = kaiming_out(ks[4], 3, 3, C1, C2)
    p["sr_conv_b"] = 0.05 * jax.random.normal(ks[5], (C2,), jnp.float32)
    p["bnsc_gamma"], p["bnsc_beta"], p["bnsc_mean"], p["bnsc_var"] = bn_stats(ks[6], C2)
    p["fc_w"] = 0.01 * jax.random.normal(ks[7], (C2, num_classes), jnp.float32)
    p["fc_b"] = 0.02 * jax.random.normal(ks[8], (num_classes,), jnp.float32)
    return p


# ----------------------------------------------------------------------------
# Pure-JAX reference (directly from raw params; does not share the folding code)
# ----------------------------------------------------------------------------
def reference_forward(p, x_nchw):
    x = jnp.transpose(x_nchw, (0, 2, 3, 1)).astype(jnp.float32)

    def conv(x, w, b):
        y = jax.lax.conv_general_dilated(
            x, w, window_strides=(1, 1), padding=((1, 1), (1, 1)),
            dimension_numbers=("NHWC", "HWIO", "NHWC"),
            precision=jax.lax.Precision.HIGHEST)
        return y + b.reshape(1, 1, 1, -1)

    def bn(x, g, b, m, v, eps=1e-5):
        return (x - m) * (g / jnp.sqrt(v + eps)) + b

    def pool2(x, op):
        n, h, w, c = x.shape
        return op(x.reshape(n, h // 2, 2, w // 2, 2, c), axis=(2, 4))

    x = jnp.maximum(conv(x, p["conv1_w"], p["conv1_b"]), 0.0)
    x = bn(x, p["bn1_gamma"], p["bn1_beta"], p["bn1_mean"], p["bn1_var"])
    x = pool2(x, jnp.max)
    h = bn(x, p["srbn_gamma"], p["srbn_beta"], p["srbn_mean"], p["srbn_var"])
    h = jnp.maximum(conv(h, p["sr_conv_w"], p["sr_conv_b"]), 0.0)
    res = jnp.pad(x, ((0, 0), (0, 0), (0, 0), (0, C2 - C1)))
    res = bn(res, p["bnsc_gamma"], p["bnsc_beta"], p["bnsc_mean"], p["bnsc_var"])
    x = jnp.clip(h + res, 0.0, 6.0)
    x = pool2(x, jnp.mean)
    pooled = jnp.mean(x, axis=(1, 2))
    return jnp.dot(pooled, p["fc_w"], precision=jax.lax.Precision.HIGHEST) + p["fc_b"]


# ----------------------------------------------------------------------------
if __name__ == "__main__":
    key = jax.random.PRNGKey(0)
    pkey, xkey = jax.random.split(key)
    params = init_params(pkey, num_classes=NC)
    packed = pack_params(params)
    n = 16                                                    # 2 grid steps of NB=8
    x = jax.random.normal(xkey, (n, CIN, IMG, IMG), jnp.float32)   # NCHW, PyTorch-style

    out = jax.block_until_ready(plain_network_forward(packed, x))
    ref = reference_forward(params, x)

    assert out.shape == (n, NC), out.shape
    # bf16 MXU operands (f32 accumulation) leave ~1e-3-level error vs the f32 reference.
    max_err = float(jnp.max(jnp.abs(out - ref)))
    assert max_err < 5e-3, f"mismatch vs pure-JAX reference: {max_err}"
    print("KERNEL_OK")
</pallas_src>

<mosaic_0001>
module attributes {stable_mosaic.version = 11 : i64} {
  func.func @fused_forward_kernel(%arg0: i32, %arg1: memref<8x16x64xf32, #tpu.memory_space<vmem>>, %arg2: memref<3x64x128xbf16, #tpu.memory_space<vmem>>, %arg3: memref<1x128xf32, #tpu.memory_space<vmem>>, %arg4: memref<1x128xf32, #tpu.memory_space<vmem>>, %arg5: memref<1x128xf32, #tpu.memory_space<vmem>>, %arg6: memref<120x64xf32, #tpu.memory_space<vmem>>, %arg7: memref<1x64xf32, #tpu.memory_space<vmem>>, %arg8: memref<3x64x128xbf16, #tpu.memory_space<vmem>>, %arg9: memref<1x128xf32, #tpu.memory_space<vmem>>, %arg10: memref<64x128xf32, #tpu.memory_space<vmem>>, %arg11: memref<1x128xf32, #tpu.memory_space<vmem>>, %arg12: memref<128x10xf32, #tpu.memory_space<vmem>>, %arg13: memref<1x10xf32, #tpu.memory_space<vmem>>, %arg14: memref<8x10xf32, #tpu.memory_space<vmem>>, %arg15: memref<8x18x64xf32, #tpu.memory_space<vmem>>, %arg16: memref<8x10x64xf32, #tpu.memory_space<vmem>>, %arg17: memref<128x128xf32, #tpu.memory_space<vmem>>) attributes {dimension_semantics = [#tpu.dimension_semantics<parallel>], iteration_bounds = array<i64: 2>, scalar_prefetch = 0 : i64, scratch_operands = 3 : i64, tpu.core_type = #tpu.core_type<tc>, window_params = [{transform_indices = @transform_0, window_bounds = array<i64: 8, 16, 64>}, {pipeline_mode = #tpu.pipeline_mode<synchronous>, transform_indices = @transform_1, window_bounds = array<i64: 3, 64, 128>}, {pipeline_mode = #tpu.pipeline_mode<synchronous>, transform_indices = @transform_2, window_bounds = array<i64: 1, 128>}, {pipeline_mode = #tpu.pipeline_mode<synchronous>, transform_indices = @transform_3, window_bounds = array<i64: 1, 128>}, {pipeline_mode = #tpu.pipeline_mode<synchronous>, transform_indices = @transform_4, window_bounds = array<i64: 1, 128>}, {pipeline_mode = #tpu.pipeline_mode<synchronous>, transform_indices = @transform_5, window_bounds = array<i64: 120, 64>}, {pipeline_mode = #tpu.pipeline_mode<synchronous>, transform_indices = @transform_6, window_bounds = array<i64: 1, 64>}, {pipeline_mode = #tpu.pipeline_mode<synchronous>, transform_indices = @transform_7, window_bounds = array<i64: 3, 64, 128>}, {pipeline_mode = #tpu.pipeline_mode<synchronous>, transform_indices = @transform_8, window_bounds = array<i64: 1, 128>}, {pipeline_mode = #tpu.pipeline_mode<synchronous>, transform_indices = @transform_9, window_bounds = array<i64: 64, 128>}, {pipeline_mode = #tpu.pipeline_mode<synchronous>, transform_indices = @transform_10, window_bounds = array<i64: 1, 128>}, {pipeline_mode = #tpu.pipeline_mode<synchronous>, transform_indices = @transform_11, window_bounds = array<i64: 128, 10>}, {pipeline_mode = #tpu.pipeline_mode<synchronous>, transform_indices = @transform_12, window_bounds = array<i64: 1, 10>}, {transform_indices = @transform_13, window_bounds = array<i64: 8, 10>}]} {
    %cst = arith.constant 0.000000e+00 : f32
    %0 = vector.broadcast %cst : f32 to vector<8x1x64xf32>
    %c0 = arith.constant 0 : index
    %c0_0 = arith.constant 0 : index
    %c0_1 = arith.constant 0 : index
    %1 = vector.load %arg15[%c0, %c0_0, %c0_1] : memref<8x18x64xf32, #tpu.memory_space<vmem>>, vector<8x1x64xf32>
    tpu.vector_store %arg15[%c0, %c0_0, %c0_1], %0 {strides = array<i32>} : memref<8x18x64xf32, #tpu.memory_space<vmem>>, vector<8x1x64xf32>,
    %c0_2 = arith.constant 0 : index
    %c17 = arith.constant 17 : index
    %c0_3 = arith.constant 0 : index
    %2 = vector.load %arg15[%c0_2, %c17, %c0_3] : memref<8x18x64xf32, #tpu.memory_space<vmem>>, vector<8x1x64xf32>
    tpu.vector_store %arg15[%c0_2, %c17, %c0_3], %0 {strides = array<i32>} : memref<8x18x64xf32, #tpu.memory_space<vmem>>, vector<8x1x64xf32>,
    %c0_4 = arith.constant 0 : index
    %c0_5 = arith.constant 0 : index
    %c0_6 = arith.constant 0 : index
    %3 = vector.load %arg1[%c0_4, %c0_5, %c0_6] : memref<8x16x64xf32, #tpu.memory_space<vmem>>, vector<8x16x64xf32>
    %c0_7 = arith.constant 0 : index
    %c1 = arith.constant 1 : index
    %c0_8 = arith.constant 0 : index
    %4 = vector.load %arg15[%c0_7, %c1, %c0_8] : memref<8x18x64xf32, #tpu.memory_space<vmem>>, vector<8x16x64xf32>
    tpu.vector_store %arg15[%c0_7, %c1, %c0_8], %3 {strides = array<i32>} : memref<8x18x64xf32, #tpu.memory_space<vmem>>, vector<8x16x64xf32>,
    %c0_9 = arith.constant 0 : index
    %c0_10 = arith.constant 0 : index
    %c0_11 = arith.constant 0 : index
    %5 = vector.load %arg15[%c0_9, %c0_10, %c0_11] : memref<8x18x64xf32, #tpu.memory_space<vmem>>, vector<8x16x64xf32>
    %6 = vector.shape_cast %5 : vector<8x16x64xf32> to vector<128x64xf32>
    %7 = arith.truncf %6 : vector<128x64xf32> to vector<128x64xbf16>
    %c0_12 = arith.constant 0 : index
    %c0_13 = arith.constant 0 : index
    %c0_14 = arith.constant 0 : index
    %8 = vector.load %arg2[%c0_12, %c0_13, %c0_14] : memref<3x64x128xbf16, #tpu.memory_space<vmem>>, vector<1x64x128xbf16>
    %9 = vector.shape_cast %8 : vector<1x64x128xbf16> to vector<64x128xbf16>
    %cst_15 = arith.constant dense<0.000000e+00> : vector<128x128xf32>
    %10 = tpu.matmul %7, %9, %cst_15 {dimension_numbers = #tpu.dot_dimension_numbers<[1], [0], [0], [1], [0, 0, 1, 1], [], []>} : vector<128x64xbf16>, vector<64x128xbf16>, vector<128x128xf32> -> vector<128x128xf32>
    %c0_16 = arith.constant 0 : index
    %c1_17 = arith.constant 1 : index
    %c0_18 = arith.constant 0 : index
    %11 = vector.load %arg15[%c0_16, %c1_17, %c0_18] : memref<8x18x64xf32, #tpu.memory_space<vmem>>, vector<8x16x64xf32>
    %12 = vector.shape_cast %11 : vector<8x16x64xf32> to vector<128x64xf32>
    %13 = arith.truncf %12 : vector<128x64xf32> to vector<128x64xbf16>
    %c1_19 = arith.constant 1 : index
    %c0_20 = arith.constant 0 : index
    %c0_21 = arith.constant 0 : index
    %14 = vector.load %arg2[%c1_19, %c0_20, %c0_21] : memref<3x64x128xbf16, #tpu.memory_space<vmem>>, vector<1x64x128xbf16>
    %15 = vector.shape_cast %14 : vector<1x64x128xbf16> to vector<64x128xbf16>
    %cst_22 = arith.constant dense<0.000000e+00> : vector<128x128xf32>
    %16 = tpu.matmul %13, %15, %cst_22 {dimension_numbers = #tpu.dot_dimension_numbers<[1], [0], [0], [1], [0, 0, 1, 1], [], []>} : vector<128x64xbf16>, vector<64x128xbf16>, vector<128x128xf32> -> vector<128x128xf32>
    %17 = arith.addf %10, %16 : vector<128x128xf32>
    %c0_23 = arith.constant 0 : index
    %c2 = arith.constant 2 : index
    %c0_24 = arith.constant 0 : index
    %18 = vector.load %arg15[%c0_23, %c2, %c0_24] : memref<8x18x64xf32, #tpu.memory_space<vmem>>, vector<8x16x64xf32>
    %19 = vector.shape_cast %18 : vector<8x16x64xf32> to vector<128x64xf32>
    %20 = arith.truncf %19 : vector<128x64xf32> to vector<128x64xbf16>
    %c2_25 = arith.constant 2 : index
    %c0_26 = arith.constant 0 : index
    %c0_27 = arith.constant 0 : index
    %21 = vector.load %arg2[%c2_25, %c0_26, %c0_27] : memref<3x64x128xbf16, #tpu.memory_space<vmem>>, vector<1x64x128xbf16>
    %22 = vector.shape_cast %21 : vector<1x64x128xbf16> to vector<64x128xbf16>
    %cst_28 = arith.constant dense<0.000000e+00> : vector<128x128xf32>
    %23 = tpu.matmul %20, %22, %cst_28 {dimension_numbers = #tpu.dot_dimension_numbers<[1], [0], [0], [1], [0, 0, 1, 1], [], []>} : vector<128x64xbf16>, vector<64x128xbf16>, vector<128x128xf32> -> vector<128x128xf32>
    %24 = arith.addf %17, %23 : vector<128x128xf32>
    %c0_29 = arith.constant 0 : index
    %c0_30 = arith.constant 0 : index
    %25 = vector.load %arg3[%c0_29, %c0_30] : memref<1x128xf32, #tpu.memory_space<vmem>>, vector<1x128xf32>
    %26 = vector.broadcast %25 : vector<1x128xf32> to vector<128x128xf32>
    %27 = arith.addf %24, %26 : vector<128x128xf32>
    %cst_31 = arith.constant 0.000000e+00 : f32
    %28 = vector.broadcast %cst_31 : f32 to vector<128x128xf32>
    %29 = arith.maximumf %27, %28 : vector<128x128xf32>
    %c0_32 = arith.constant 0 : index
    %c0_33 = arith.constant 0 : index
    %30 = vector.load %arg4[%c0_32, %c0_33] : memref<1x128xf32, #tpu.memory_space<vmem>>, vector<1x128xf32>
    %31 = vector.broadcast %30 : vector<1x128xf32> to vector<128x128xf32>
    %32 = arith.mulf %29, %31 : vector<128x128xf32>
    %c0_34 = arith.constant 0 : index
    %c0_35 = arith.constant 0 : index
    %33 = vector.load %arg5[%c0_34, %c0_35] : memref<1x128xf32, #tpu.memory_space<vmem>>, vector<1x128xf32>
    %34 = vector.broadcast %33 : vector<1x128xf32> to vector<128x128xf32>
    %35 = arith.addf %32, %34 : vector<128x128xf32>
    %c0_36 = arith.constant 0 : index
    %c0_37 = arith.constant 0 : index
    %36 = vector.load %arg17[%c0_36, %c0_37] : memref<128x128xf32, #tpu.memory_space<vmem>>, vector<128x128xf32>
    tpu.vector_store %arg17[%c0_36, %c0_37], %35 {strides = array<i32>} : memref<128x128xf32, #tpu.memory_space<vmem>>, vector<128x128xf32>,
    %c0_38 = arith.constant 0 : index
    %c0_39 = arith.constant 0 : index
    %37 = tpu.strided_load %arg17[%c0_38, %c0_39] {strides = array<i32: 2, 1>} : memref<128x128xf32, #tpu.memory_space<vmem>>, vector<64x128xf32>
    %c1_40 = arith.constant 1 : index
    %c0_41 = arith.constant 0 : index
    %38 = tpu.strided_load %arg17[%c1_40, %c0_41] {strides = array<i32: 2, 1>} : memref<128x128xf32, #tpu.memory_space<vmem>>, vector<64x128xf32>
    %39 = arith.maximumf %37, %38 : vector<64x128xf32>
    %40 = vector.extract_strided_slice %39 {offsets = [0, 0], sizes = [64, 120], strides = [1, 1]} : vector<64x128xf32> to vector<64x120xf32>
    %41 = vector.extract_strided_slice %39 {offsets = [0, 8], sizes = [64, 120], strides = [1, 1]} : vector<64x128xf32> to vector<64x120xf32>
    %42 = arith.maximumf %40, %41 : vector<64x120xf32>
    %c0_42 = arith.constant 0 : index
    %c0_43 = arith.constant 0 : index
    %43 = vector.load %arg6[%c0_42, %c0_43] : memref<120x64xf32, #tpu.memory_space<vmem>>, vector<120x64xf32>
    %cst_44 = arith.constant dense<0.000000e+00> : vector<64x64xf32>
    %44 = tpu.matmul %42, %43, %cst_44 {dimension_numbers = #tpu.dot_dimension_numbers<[1], [0], [0], [1], [0, 0, 1, 1], [], []>} : vector<64x120xf32>, vector<120x64xf32>, vector<64x64xf32> -> vector<64x64xf32>
    %cst_45 = arith.constant 0.000000e+00 : f32
    %45 = vector.broadcast %cst_45 : f32 to vector<8x1x64xf32>
    %c0_46 = arith.constant 0 : index
    %c0_47 = arith.constant 0 : index
    %c0_48 = arith.constant 0 : index
    %46 = vector.load %arg16[%c0_46, %c0_47, %c0_48] : memref<8x10x64xf32, #tpu.memory_space<vmem>>, vector<8x1x64xf32>
    tpu.vector_store %arg16[%c0_46, %c0_47, %c0_48], %45 {strides = array<i32>} : memref<8x10x64xf32, #tpu.memory_space<vmem>>, vector<8x1x64xf32>,
    %c0_49 = arith.constant 0 : index
    %c9 = arith.constant 9 : index
    %c0_50 = arith.constant 0 : index
    %47 = vector.load %arg16[%c0_49, %c9, %c0_50] : memref<8x10x64xf32, #tpu.memory_space<vmem>>, vector<8x1x64xf32>
    tpu.vector_store %arg16[%c0_49, %c9, %c0_50], %45 {strides = array<i32>} : memref<8x10x64xf32, #tpu.memory_space<vmem>>, vector<8x1x64xf32>,
    %48 = vector.shape_cast %44 : vector<64x64xf32> to vector<8x8x64xf32>
    %c0_51 = arith.constant 0 : index
    %c0_52 = arith.constant 0 : index
    %49 = vector.load %arg7[%c0_51, %c0_52] : memref<1x64xf32, #tpu.memory_space<vmem>>, vector<1x64xf32>
    %50 = vector.shape_cast %49 : vector<1x64xf32> to vector<1x1x64xf32>
    %51 = vector.broadcast %50 : vector<1x1x64xf32> to vector<8x8x64xf32>
    %52 = arith.addf %48, %51 : vector<8x8x64xf32>
    %c0_53 = arith.constant 0 : index
    %c1_54 = arith.constant 1 : index
    %c0_55 = arith.constant 0 : index
    %53 = vector.load %arg16[%c0_53, %c1_54, %c0_55] : memref<8x10x64xf32, #tpu.memory_space<vmem>>, vector<8x8x64xf32>
    tpu.vector_store %arg16[%c0_53, %c1_54, %c0_55], %52 {strides = array<i32>} : memref<8x10x64xf32, #tpu.memory_space<vmem>>, vector<8x8x64xf32>,
    %c0_56 = arith.constant 0 : index
    %c0_57 = arith.constant 0 : index
    %c0_58 = arith.constant 0 : index
    %54 = vector.load %arg16[%c0_56, %c0_57, %c0_58] : memref<8x10x64xf32, #tpu.memory_space<vmem>>, vector<8x8x64xf32>
    %55 = vector.shape_cast %54 : vector<8x8x64xf32> to vector<64x64xf32>
    %56 = arith.truncf %55 : vector<64x64xf32> to vector<64x64xbf16>
    %c0_59 = arith.constant 0 : index
    %c0_60 = arith.constant 0 : index
    %c0_61 = arith.constant 0 : index
    %57 = vector.load %arg8[%c0_59, %c0_60, %c0_61] : memref<3x64x128xbf16, #tpu.memory_space<vmem>>, vector<1x64x128xbf16>
    %58 = vector.shape_cast %57 : vector<1x64x128xbf16> to vector<64x128xbf16>
    %cst_62 = arith.constant dense<0.000000e+00> : vector<64x128xf32>
    %59 = tpu.matmul %56, %58, %cst_62 {dimension_numbers = #tpu.dot_dimension_numbers<[1], [0], [0], [1], [0, 0, 1, 1], [], []>} : vector<64x64xbf16>, vector<64x128xbf16>, vector<64x128xf32> -> vector<64x128xf32>
    %c0_63 = arith.constant 0 : index
    %c1_64 = arith.constant 1 : index
    %c0_65 = arith.constant 0 : index
    %60 = vector.load %arg16[%c0_63, %c1_64, %c0_65] : memref<8x10x64xf32, #tpu.memory_space<vmem>>, vector<8x8x64xf32>
    %61 = vector.shape_cast %60 : vector<8x8x64xf32> to vector<64x64xf32>
    %62 = arith.truncf %61 : vector<64x64xf32> to vector<64x64xbf16>
    %c1_66 = arith.constant 1 : index
    %c0_67 = arith.constant 0 : index
    %c0_68 = arith.constant 0 : index
    %63 = vector.load %arg8[%c1_66, %c0_67, %c0_68] : memref<3x64x128xbf16, #tpu.memory_space<vmem>>, vector<1x64x128xbf16>
    %64 = vector.shape_cast %63 : vector<1x64x128xbf16> to vector<64x128xbf16>
    %cst_69 = arith.constant dense<0.000000e+00> : vector<64x128xf32>
    %65 = tpu.matmul %62, %64, %cst_69 {dimension_numbers = #tpu.dot_dimension_numbers<[1], [0], [0], [1], [0, 0, 1, 1], [], []>} : vector<64x64xbf16>, vector<64x128xbf16>, vector<64x128xf32> -> vector<64x128xf32>
    %66 = arith.addf %59, %65 : vector<64x128xf32>
    %c0_70 = arith.constant 0 : index
    %c2_71 = arith.constant 2 : index
    %c0_72 = arith.constant 0 : index
    %67 = vector.load %arg16[%c0_70, %c2_71, %c0_72] : memref<8x10x64xf32, #tpu.memory_space<vmem>>, vector<8x8x64xf32>
    %68 = vector.shape_cast %67 : vector<8x8x64xf32> to vector<64x64xf32>
    %69 = arith.truncf %68 : vector<64x64xf32> to vector<64x64xbf16>
    %c2_73 = arith.constant 2 : index
    %c0_74 = arith.constant 0 : index
    %c0_75 = arith.constant 0 : index
    %70 = vector.load %arg8[%c2_73, %c0_74, %c0_75] : memref<3x64x128xbf16, #tpu.memory_space<vmem>>, vector<1x64x128xbf16>
    %71 = vector.shape_cast %70 : vector<1x64x128xbf16> to vector<64x128xbf16>
    %cst_76 = arith.constant dense<0.000000e+00> : vector<64x128xf32>
    %72 = tpu.matmul %69, %71, %cst_76 {dimension_numbers = #tpu.dot_dimension_numbers<[1], [0], [0], [1], [0, 0, 1, 1], [], []>} : vector<64x64xbf16>, vector<64x128xbf16>, vector<64x128xf32> -> vector<64x128xf32>
    %73 = arith.addf %66, %72 : vector<64x128xf32>
    %c0_77 = arith.constant 0 : index
    %c0_78 = arith.constant 0 : index
    %74 = vector.load %arg9[%c0_77, %c0_78] : memref<1x128xf32, #tpu.memory_space<vmem>>, vector<1x128xf32>
    %75 = vector.broadcast %74 : vector<1x128xf32> to vector<64x128xf32>
    %76 = arith.addf %73, %75 : vector<64x128xf32>
    %cst_79 = arith.constant 0.000000e+00 : f32
    %77 = vector.broadcast %cst_79 : f32 to vector<64x128xf32>
    %78 = arith.maximumf %76, %77 : vector<64x128xf32>
    %c0_80 = arith.constant 0 : index
    %c0_81 = arith.constant 0 : index
    %79 = vector.load %arg10[%c0_80, %c0_81] : memref<64x128xf32, #tpu.memory_space<vmem>>, vector<64x128xf32>
    %cst_82 = arith.constant dense<0.000000e+00> : vector<64x128xf32>
    %80 = tpu.matmul %44, %79, %cst_82 {dimension_numbers = #tpu.dot_dimension_numbers<[1], [0], [0], [1], [0, 0, 1, 1], [], []>} : vector<64x64xf32>, vector<64x128xf32>, vector<64x128xf32> -> vector<64x128xf32>
    %c0_83 = arith.constant 0 : index
    %c0_84 = arith.constant 0 : index
    %81 = vector.load %arg11[%c0_83, %c0_84] : memref<1x128xf32, #tpu.memory_space<vmem>>, vector<1x128xf32>
    %82 = vector.broadcast %81 : vector<1x128xf32> to vector<64x128xf32>
    %83 = arith.addf %80, %82 : vector<64x128xf32>
    %84 = arith.addf %78, %83 : vector<64x128xf32>
    %cst_85 = arith.constant 0.000000e+00 : f32
    %85 = vector.broadcast %cst_85 : f32 to vector<64x128xf32>
    %86 = arith.maximumf %84, %85 : vector<64x128xf32>
    %cst_86 = arith.constant 6.000000e+00 : f32
    %87 = vector.broadcast %cst_86 : f32 to vector<64x128xf32>
    %88 = arith.minimumf %86, %87 : vector<64x128xf32>
    %89 = vector.shape_cast %88 : vector<64x128xf32> to vector<8x8x128xf32>
    %cst_87 = arith.constant dense<0.000000e+00> : vector<8x128xf32>
    %90 = vector.multi_reduction <add>, %89, %cst_87 [1] : vector<8x8x128xf32> to vector<8x128xf32>
    %c0_88 = arith.constant 0 : index
    %c0_89 = arith.constant 0 : index
    %91 = vector.load %arg12[%c0_88, %c0_89] : memref<128x10xf32, #tpu.memory_space<vmem>>, vector<128x10xf32>
    %cst_90 = arith.constant dense<0.000000e+00> : vector<8x10xf32>
    %92 = tpu.matmul %90, %91, %cst_90 {dimension_numbers = #tpu.dot_dimension_numbers<[1], [0], [0], [1], [0, 0, 1, 1], [], []>} : vector<8x128xf32>, vector<128x10xf32>, vector<8x10xf32> -> vector<8x10xf32>
    %c0_91 = arith.constant 0 : index
    %c0_92 = arith.constant 0 : index
    %93 = vector.load %arg13[%c0_91, %c0_92] : memref<1x10xf32, #tpu.memory_space<vmem>>, vector<1x10xf32>
    %94 = vector.broadcast %93 : vector<1x10xf32> to vector<8x10xf32>
    %95 = arith.addf %92, %94 : vector<8x10xf32>
    %c0_93 = arith.constant 0 : index
    %c0_94 = arith.constant 0 : index
    %96 = vector.load %arg14[%c0_93, %c0_94] : memref<8x10xf32, #tpu.memory_space<vmem>>, vector<8x10xf32>
    tpu.vector_store %arg14[%c0_93, %c0_94], %95 {strides = array<i32>} : memref<8x10xf32, #tpu.memory_space<vmem>>, vector<8x10xf32>,
    return
  }
  func.func @transform_0(%arg0: i32) -> (i32, i32, i32) {
    %c0_i32 = arith.constant 0 : i32
    %c0_i32_0 = arith.constant 0 : i32
    %c0_i32_1 = arith.constant 0 : i32
    return %arg0, %c0_i32, %c0_i32_0 : i32, i32, i32
  }
  func.func @transform_1(%arg0: i32) -> (i32, i32, i32) {
    %c0_i32 = arith.constant 0 : i32
    %c0_i32_0 = arith.constant 0 : i32
    %c0_i32_1 = arith.constant 0 : i32
    %c0_i32_2 = arith.constant 0 : i32
    return %c0_i32, %c0_i32_0, %c0_i32_1 : i32, i32, i32
  }
  func.func @transform_2(%arg0: i32) -> (i32, i32) {
    %c0_i32 = arith.constant 0 : i32
    %c0_i32_0 = arith.constant 0 : i32
    %c0_i32_1 = arith.constant 0 : i32
    return %c0_i32, %c0_i32_0 : i32, i32
  }
  func.func @transform_3(%arg0: i32) -> (i32, i32) {
    %c0_i32 = arith.constant 0 : i32
    %c0_i32_0 = arith.constant 0 : i32
    %c0_i32_1 = arith.constant 0 : i32
    return %c0_i32, %c0_i32_0 : i32, i32
  }
  func.func @transform_4(%arg0: i32) -> (i32, i32) {
    %c0_i32 = arith.constant 0 : i32
    %c0_i32_0 = arith.constant 0 : i32
    %c0_i32_1 = arith.constant 0 : i32
    return %c0_i32, %c0_i32_0 : i32, i32
  }
  func.func @transform_5(%arg0: i32) -> (i32, i32) {
    %c0_i32 = arith.constant 0 : i32
    %c0_i32_0 = arith.constant 0 : i32
    %c0_i32_1 = arith.constant 0 : i32
    return %c0_i32, %c0_i32_0 : i32, i32
  }
  func.func @transform_6(%arg0: i32) -> (i32, i32) {
    %c0_i32 = arith.constant 0 : i32
    %c0_i32_0 = arith.constant 0 : i32
    %c0_i32_1 = arith.constant 0 : i32
    return %c0_i32, %c0_i32_0 : i32, i32
  }
  func.func @transform_7(%arg0: i32) -> (i32, i32, i32) {
    %c0_i32 = arith.constant 0 : i32
    %c0_i32_0 = arith.constant 0 : i32
    %c0_i32_1 = arith.constant 0 : i32
    %c0_i32_2 = arith.constant 0 : i32
    return %c0_i32, %c0_i32_0, %c0_i32_1 : i32, i32, i32
  }
  func.func @transform_8(%arg0: i32) -> (i32, i32) {
    %c0_i32 = arith.constant 0 : i32
    %c0_i32_0 = arith.constant 0 : i32
    %c0_i32_1 = arith.constant 0 : i32
    return %c0_i32, %c0_i32_0 : i32, i32
  }
  func.func @transform_9(%arg0: i32) -> (i32, i32) {
    %c0_i32 = arith.constant 0 : i32
    %c0_i32_0 = arith.constant 0 : i32
    %c0_i32_1 = arith.constant 0 : i32
    return %c0_i32, %c0_i32_0 : i32, i32
  }
  func.func @transform_10(%arg0: i32) -> (i32, i32) {
    %c0_i32 = arith.constant 0 : i32
    %c0_i32_0 = arith.constant 0 : i32
    %c0_i32_1 = arith.constant 0 : i32
    return %c0_i32, %c0_i32_0 : i32, i32
  }
  func.func @transform_11(%arg0: i32) -> (i32, i32) {
    %c0_i32 = arith.constant 0 : i32
    %c0_i32_0 = arith.constant 0 : i32
    %c0_i32_1 = arith.constant 0 : i32
    return %c0_i32, %c0_i32_0 : i32, i32
  }
  func.func @transform_12(%arg0: i32) -> (i32, i32) {
    %c0_i32 = arith.constant 0 : i32
    %c0_i32_0 = arith.constant 0 : i32
    %c0_i32_1 = arith.constant 0 : i32
    return %c0_i32, %c0_i32_0 : i32, i32
  }
  func.func @transform_13(%arg0: i32) -> (i32, i32) {
    %c0_i32 = arith.constant 0 : i32
    %c0_i32_0 = arith.constant 0 : i32
    return %arg0, %c0_i32 : i32, i32
  }
}

</mosaic_0001>

<llo_original>
// kernel: plain_network_forward.1
$region0: #{plain_network_forward.1}
  #allocation0 [shape = 'u32[]', space=smem, size = 0x4, offset = 0x4, fixed_abs, tag = 'smem constant byte address 0x4 - core index']
  #allocation1 [shape = 'u32[144,128]{1,0:T(1,128)}', space=vmem, size = 0x12000, scoped, tag = 'internal scratch']
  #allocation2 [shape = 'f32[8,18,64]{2,1,0:T(8,128)}', space=vmem, size = 0x18000, scoped, tag = 'scratch operand']
  #allocation3 [shape = 'f32[8,10,64]{2,1,0:T(8,128)}', space=vmem, size = 0x10000, scoped, tag = 'scratch operand']
  #allocation4 [shape = 'f32[128,128]{1,0:T(8,128)}', space=vmem, size = 0x10000, scoped, tag = 'scratch operand']
  %s0 = inlined_call_operand.vmem [shape: f32[16,16,64], index: 0, kind: input, shape index: {}]
  %s1 = inlined_call_operand.vmem [shape: bf16[3,64,128], index: 1, kind: input, shape index: {}]
  %s2 = inlined_call_operand.vmem [shape: f32[1,128], index: 2, kind: input, shape index: {}]
  %s3 = inlined_call_operand.vmem [shape: f32[1,128], index: 3, kind: input, shape index: {}]
  %s4 = inlined_call_operand.vmem [shape: f32[1,128], index: 4, kind: input, shape index: {}]
  %s5 = inlined_call_operand.vmem [shape: f32[120,64], index: 5, kind: input, shape index: {}]
  %s6 = inlined_call_operand.vmem [shape: f32[1,64], index: 6, kind: input, shape index: {}]
  %s7 = inlined_call_operand.vmem [shape: bf16[3,64,128], index: 7, kind: input, shape index: {}]
  %s8 = inlined_call_operand.vmem [shape: f32[1,128], index: 8, kind: input, shape index: {}]
  %s9 = inlined_call_operand.vmem [shape: f32[64,128], index: 9, kind: input, shape index: {}]
  %s10 = inlined_call_operand.vmem [shape: f32[1,128], index: 10, kind: input, shape index: {}]
  %s11 = inlined_call_operand.vmem [shape: f32[128,10], index: 11, kind: input, shape index: {}]
  %s12 = inlined_call_operand.vmem [shape: f32[1,10], index: 12, kind: input, shape index: {}]
  %s13 = inlined_call_operand.hbm [shape: f32[16,10], index: 13, kind: output, shape index: {}]
  %s14 = sld [smem:[#allocation0]]
  $region85: #{plain_network_forward.1} parent=0
    _
  %s16 = ssub.s32 1, %s14
  %s17 = scalar_select 0, %s16, %s14
  $region1: #{plain_network_forward.1} parent=0
    #allocation5 [shape = 'u8[8192]{0}', space=vmem, size = 0x2000, scoped, tag = 'output window, operand 0']
    #allocation6 [shape = 's32[2]{0}', space=sflag, size = 0x8, scoped, tag = 'scoped memory for plain_network_forward.1']
    %18 = vsyncpa [#allocation6], 0
    %s19 = scalar_lea.sflag [#allocation6], 1
    %20 = vsyncpa %s19, 0
    loop: start=0, step=1, limit=4
    $region2: #{plain_network_forward.1} parent=1 // loop_pre_header
      _
    $region3: #{plain_network_forward.1} parent=1 // loop_header
      %s22 = sphi 0, %s26
      %p23 = scmp.ge.s32.totalorder %s22, 4
      %s32 = sphi 0, %s34
      %s35 = sphi 0, %s32
      %s36 = sphi 0, %s35
      %s52 = sphi 0, %s36
      %s56 = sphi 0, %s56
      %s58 = sphi 0, %s56
      %s59 = sphi 0, %s58
      %s73 = sphi 0, %s59
      %s77 = sphi 0, %s77
      %s79 = sphi 0, %s77
      %s80 = sphi 0, %s79
      %s94 = sphi 0, %s80
      %s98 = sphi 0, %s98
      %s100 = sphi 0, %s98
      %s101 = sphi 0, %s100
      %s115 = sphi 0, %s101
      %s119 = sphi 0, %s119
      %s121 = sphi 0, %s119
      %s122 = sphi 0, %s121
      %s136 = sphi 0, %s122
      %s140 = sphi 0, %s140
      %s142 = sphi 0, %s140
      %s143 = sphi 0, %s142
      %s157 = sphi 0, %s143
      %s161 = sphi 0, %s161
      %s163 = sphi 0, %s161
      %s164 = sphi 0, %s163
      %s178 = sphi 0, %s164
      %s182 = sphi 0, %s182
      %s184 = sphi 0, %s182
      %s185 = sphi 0, %s184
      %s199 = sphi 0, %s185
      %s203 = sphi 0, %s203
      %s205 = sphi 0, %s203
      %s206 = sphi 0, %s205
      %s220 = sphi 0, %s206
      %s224 = sphi 0, %s224
      %s226 = sphi 0, %s224
      %s227 = sphi 0, %s226
      %s241 = sphi 0, %s227
      %s245 = sphi 0, %s245
      %s247 = sphi 0, %s245
      %s248 = sphi 0, %s247
      %s262 = sphi 0, %s248
      %s266 = sphi 0, %s266
      %s268 = sphi 0, %s266
      %s269 = sphi 0, %s268
      %s283 = sphi 0, %s269
      %s287 = sphi 0, %s287
      %s289 = sphi 0, %s287
      %s290 = sphi 0, %s289
      %s304 = sphi 0, %s290
      %s310 = sphi 0, %s312
      %s313 = sphi 0, %s310
      %s314 = sphi 0, %s313
      %s330 = sphi 0, %s314
    $region4: #{plain_network_forward.1} parent=1 // loop_header_branch
      %25 = sbr.rel (%p23) target = $region8
    $region5: #{plain_network_forward.1} parent=1 // loop_body
      %s27 = ssub.s32 %s22, 1
      %s28 = ssub.s32 %s22, 2
      %s29 = sadd.s32 %s22, 1
      %s30 = ssub.s32 %s22, %s29
      %p31 = scmp.eq.s32.totalorder %s30, 0
      %s33 = sadd.s32 %s32, 1
      %s34 = scalar_select %p31, %s32, %s33
      %p37 = pneg %p31
      %p38 = scmp.eq.s32.totalorder %s22, 1
      %p39 = por %p37, %p38
      %p40 = scmp.ne.s32.totalorder %s32, %s35
      %p41 = scmp.eq.s32.totalorder %s22, 0
      %p42 = por %p40, %p41
      %p43 = scmp.ne.s32.totalorder %s32, %s35
      %p44 = scmp.eq.s32.totalorder %s27, 1
      %p45 = por %p43, %p44
      %p46 = scmp.ne.s32.totalorder %s35, %s36
      %p47 = scmp.eq.s32.totalorder %s27, 0
      %p48 = por %p46, %p47
      %p49 = scmp.ne.s32.totalorder %s35, %s36
      %p50 = scmp.eq.s32.totalorder %s28, 1
      %p51 = por %p49, %p50
      %p53 = scmp.ne.s32.totalorder %s36, %s52
      %p54 = scmp.eq.s32.totalorder %s28, 0
      %p55 = por %p53, %p54
      %s57 = sadd.s32 %s56, 1
      %p60 = scmp.eq.s32.totalorder %s22, 1
      %p61 = scmp.ne.s32.totalorder %s56, %s58
      %p62 = scmp.eq.s32.totalorder %s22, 0
      %p63 = por %p61, %p62
      %p64 = scmp.ne.s32.totalorder %s56, %s58
      %p65 = scmp.eq.s32.totalorder %s27, 1
      %p66 = por %p64, %p65
      %p67 = scmp.ne.s32.totalorder %s58, %s59
      %p68 = scmp.eq.s32.totalorder %s27, 0
      %p69 = por %p67, %p68
      %p70 = scmp.ne.s32.totalorder %s58, %s59
      %p71 = scmp.eq.s32.totalorder %s28, 1
      %p72 = por %p70, %p71
      %p74 = scmp.ne.s32.totalorder %s59, %s73
      %p75 = scmp.eq.s32.totalorder %s28, 0
      %p76 = por %p74, %p75
      %s78 = sadd.s32 %s77, 1
      %p81 = scmp.eq.s32.totalorder %s22, 1
      %p82 = scmp.ne.s32.totalorder %s77, %s79
      %p83 = scmp.eq.s32.totalorder %s22, 0
      %p84 = por %p82, %p83
      %p85 = scmp.ne.s32.totalorder %s77, %s79
      %p86 = scmp.eq.s32.totalorder %s27, 1
      %p87 = por %p85, %p86
      %p88 = scmp.ne.s32.totalorder %s79, %s80
      %p89 = scmp.eq.s32.totalorder %s27, 0
      %p90 = por %p88, %p89
      %p91 = scmp.ne.s32.totalorder %s79, %s80
      %p92 = scmp.eq.s32.totalorder %s28, 1
      %p93 = por %p91, %p92
      %p95 = scmp.ne.s32.totalorder %s80, %s94
      %p96 = scmp.eq.s32.totalorder %s28, 0
      %p97 = por %p95, %p96
      %s99 = sadd.s32 %s98, 1
      %p102 = scmp.eq.s32.totalorder %s22, 1
      %p103 = scmp.ne.s32.totalorder %s98, %s100
      %p104 = scmp.eq.s32.totalorder %s22, 0
      %p105 = por %p103, %p104
      %p106 = scmp.ne.s32.totalorder %s98, %s100
      %p107 = scmp.eq.s32.totalorder %s27, 1
      %p108 = por %p106, %p107
      %p109 = scmp.ne.s32.totalorder %s100, %s101
      %p110 = scmp.eq.s32.totalorder %s27, 0
      %p111 = por %p109, %p110
      %p112 = scmp.ne.s32.totalorder %s100, %s101
      %p113 = scmp.eq.s32.totalorder %s28, 1
      %p114 = por %p112, %p113
      %p116 = scmp.ne.s32.totalorder %s101, %s115
      %p117 = scmp.eq.s32.totalorder %s28, 0
      %p118 = por %p116, %p117
      %s120 = sadd.s32 %s119, 1
      %p123 = scmp.eq.s32.totalorder %s22, 1
      %p124 = scmp.ne.s32.totalorder %s119, %s121
      %p125 = scmp.eq.s32.totalorder %s22, 0
      %p126 = por %p124, %p125
      %p127 = scmp.ne.s32.totalorder %s119, %s121
      %p128 = scmp.eq.s32.totalorder %s27, 1
      %p129 = por %p127, %p128
      %p130 = scmp.ne.s32.totalorder %s121, %s122
      %p131 = scmp.eq.s32.totalorder %s27, 0
      %p132 = por %p130, %p131
      %p133 = scmp.ne.s32.totalorder %s121, %s122
      %p134 = scmp.eq.s32.totalorder %s28, 1
      %p135 = por %p133, %p134
      %p137 = scmp.ne.s32.totalorder %s122, %s136
      %p138 = scmp.eq.s32.totalorder %s28, 0
      %p139 = por %p137, %p138
      %s141 = sadd.s32 %s140, 1
      %p144 = scmp.eq.s32.totalorder %s22, 1
      %p145 = scmp.ne.s32.totalorder %s140, %s142
      %p146 = scmp.eq.s32.totalorder %s22, 0
      %p147 = por %p145, %p146
      %p148 = scmp.ne.s32.totalorder %s140, %s142
      %p149 = scmp.eq.s32.totalorder %s27, 1
      %p150 = por %p148, %p149
      %p151 = scmp.ne.s32.totalorder %s142, %s143
      %p152 = scmp.eq.s32.totalorder %s27, 0
      %p153 = por %p151, %p152
      %p154 = scmp.ne.s32.totalorder %s142, %s143
      %p155 = scmp.eq.s32.totalorder %s28, 1
      %p156 = por %p154, %p155
      %p158 = scmp.ne.s32.totalorder %s143, %s157
      %p159 = scmp.eq.s32.totalorder %s28, 0
      %p160 = por %p158, %p159
      %s162 = sadd.s32 %s161, 1
      %p165 = scmp.eq.s32.totalorder %s22, 1
      %p166 = scmp.ne.s32.totalorder %s161, %s163
      %p167 = scmp.eq.s32.totalorder %s22, 0
      %p168 = por %p166, %p167
      %p169 = scmp.ne.s32.totalorder %s161, %s163
      %p170 = scmp.eq.s32.totalorder %s27, 1
      %p171 = por %p169, %p170
      %p172 = scmp.ne.s32.totalorder %s163, %s164
      %p173 = scmp.eq.s32.totalorder %s27, 0
      %p174 = por %p172, %p173
      %p175 = scmp.ne.s32.totalorder %s163, %s164
      %p176 = scmp.eq.s32.totalorder %s28, 1
      %p177 = por %p175, %p176
      %p179 = scmp.ne.s32.totalorder %s164, %s178
      %p180 = scmp.eq.s32.totalorder %s28, 0
      %p181 = por %p179, %p180
      %s183 = sadd.s32 %s182, 1
      %p186 = scmp.eq.s32.totalorder %s22, 1
      %p187 = scmp.ne.s32.totalorder %s182, %s184
      %p188 = scmp.eq.s32.totalorder %s22, 0
      %p189 = por %p187, %p188
      %p190 = scmp.ne.s32.totalorder %s182, %s184
      %p191 = scmp.eq.s32.totalorder %s27, 1
      %p192 = por %p190, %p191
      %p193 = scmp.ne.s32.totalorder %s184, %s185
      %p194 = scmp.eq.s32.totalorder %s27, 0
      %p195 = por %p193, %p194
      %p196 = scmp.ne.s32.totalorder %s184, %s185
      %p197 = scmp.eq.s32.totalorder %s28, 1
      %p198 = por %p196, %p197
      %p200 = scmp.ne.s32.totalorder %s185, %s199
      %p201 = scmp.eq.s32.totalorder %s28, 0
      %p202 = por %p200, %p201
      %s204 = sadd.s32 %s203, 1
      %p207 = scmp.eq.s32.totalorder %s22, 1
      %p208 = scmp.ne.s32.totalorder %s203, %s205
      %p209 = scmp.eq.s32.totalorder %s22, 0
      %p210 = por %p208, %p209
      %p211 = scmp.ne.s32.totalorder %s203, %s205
      %p212 = scmp.eq.s32.totalorder %s27, 1
      %p213 = por %p211, %p212
      %p214 = scmp.ne.s32.totalorder %s205, %s206
      %p215 = scmp.eq.s32.totalorder %s27, 0
      %p216 = por %p214, %p215
      %p217 = scmp.ne.s32.totalorder %s205, %s206
      %p218 = scmp.eq.s32.totalorder %s28, 1
      %p219 = por %p217, %p218
      %p221 = scmp.ne.s32.totalorder %s206, %s220
      %p222 = scmp.eq.s32.totalorder %s28, 0
      %p223 = por %p221, %p222
      %s225 = sadd.s32 %s224, 1
      %p228 = scmp.eq.s32.totalorder %s22, 1
      %p229 = scmp.ne.s32.totalorder %s224, %s226
      %p230 = scmp.eq.s32.totalorder %s22, 0
      %p231 = por %p229, %p230
      %p232 = scmp.ne.s32.totalorder %s224, %s226
      %p233 = scmp.eq.s32.totalorder %s27, 1
      %p234 = por %p232, %p233
      %p235 = scmp.ne.s32.totalorder %s226, %s227
      %p236 = scmp.eq.s32.totalorder %s27, 0
      %p237 = por %p235, %p236
      %p238 = scmp.ne.s32.totalorder %s226, %s227
      %p239 = scmp.eq.s32.totalorder %s28, 1
      %p240 = por %p238, %p239
      %p242 = scmp.ne.s32.totalorder %s227, %s241
      %p243 = scmp.eq.s32.totalorder %s28, 0
      %p244 = por %p242, %p243
      %s246 = sadd.s32 %s245, 1
      %p249 = scmp.eq.s32.totalorder %s22, 1
      %p250 = scmp.ne.s32.totalorder %s245, %s247
      %p251 = scmp.eq.s32.totalorder %s22, 0
      %p252 = por %p250, %p251
      %p253 = scmp.ne.s32.totalorder %s245, %s247
      %p254 = scmp.eq.s32.totalorder %s27, 1
      %p255 = por %p253, %p254
      %p256 = scmp.ne.s32.totalorder %s247, %s248
      %p257 = scmp.eq.s32.totalorder %s27, 0
      %p258 = por %p256, %p257
      %p259 = scmp.ne.s32.totalorder %s247, %s248
      %p260 = scmp.eq.s32.totalorder %s28, 1
      %p261 = por %p259, %p260
      %p263 = scmp.ne.s32.totalorder %s248, %s262
      %p264 = scmp.eq.s32.totalorder %s28, 0
      %p265 = por %p263, %p264
      %s267 = sadd.s32 %s266, 1
      %p270 = scmp.eq.s32.totalorder %s22, 1
      %p271 = scmp.ne.s32.totalorder %s266, %s268
      %p272 = scmp.eq.s32.totalorder %s22, 0
      %p273 = por %p271, %p272
      %p274 = scmp.ne.s32.totalorder %s266, %s268
      %p275 = scmp.eq.s32.totalorder %s27, 1
      %p276 = por %p274, %p275
      %p277 = scmp.ne.s32.totalorder %s268, %s269
      %p278 = scmp.eq.s32.totalorder %s27, 0
      %p279 = por %p277, %p278
      %p280 = scmp.ne.s32.totalorder %s268, %s269
      %p281 = scmp.eq.s32.totalorder %s28, 1
      %p282 = por %p280, %p281
      %p284 = scmp.ne.s32.totalorder %s269, %s283
      %p285 = scmp.eq.s32.totalorder %s28, 0
      %p286 = por %p284, %p285
      %s288 = sadd.s32 %s287, 1
      %p291 = scmp.eq.s32.totalorder %s22, 1
      %p292 = scmp.ne.s32.totalorder %s287, %s289
      %p293 = scmp.eq.s32.totalorder %s22, 0
      %p294 = por %p292, %p293
      %p295 = scmp.ne.s32.totalorder %s287, %s289
      %p296 = scmp.eq.s32.totalorder %s27, 1
      %p297 = por %p295, %p296
      %p298 = scmp.ne.s32.totalorder %s289, %s290
      %p299 = scmp.eq.s32.totalorder %s27, 0
      %p300 = por %p298, %p299
      %p301 = scmp.ne.s32.totalorder %s289, %s290
      %p302 = scmp.eq.s32.totalorder %s28, 1
      %p303 = por %p301, %p302
      %p305 = scmp.ne.s32.totalorder %s290, %s304
      %p306 = scmp.eq.s32.totalorder %s28, 0
      %p307 = por %p305, %p306
      %s308 = ssub.s32 %s22, %s29
      %p309 = scmp.eq.s32.totalorder %s308, 0
      %s311 = sadd.s32 %s310, 1
      %s312 = scalar_select %p309, %s310, %s311
      %p315 = pneg %p309
      %p316 = scmp.eq.s32.totalorder %s22, 1
      %p317 = por %p315, %p316
      %p318 = scmp.ne.s32.totalorder %s310, %s313
      %p319 = scmp.eq.s32.totalorder %s22, 0
      %p320 = por %p318, %p319
      %p321 = scmp.ne.s32.totalorder %s310, %s313
      %p322 = scmp.eq.s32.totalorder %s27, 1
      %p323 = por %p321, %p322
      %p324 = scmp.ne.s32.totalorder %s313, %s314
      %p325 = scmp.eq.s32.totalorder %s27, 0
      %p326 = por %p324, %p325
      %p327 = scmp.ne.s32.totalorder %s313, %s314
      %p328 = scmp.eq.s32.totalorder %s28, 1
      %p329 = por %p327, %p328
      %p331 = scmp.ne.s32.totalorder %s314, %s330
      %p332 = scmp.eq.s32.totalorder %s28, 0
      %p333 = por %p331, %p332
      %p334 = scmp.le.s32.totalorder 1, %s22
      %p335 = scmp.lt.s32.totalorder %s22, 3
      %p336 = pnand %p334, %p335
      %p337 = pneg %p336
      // Predicated region
      $region9: #{plain_network_forward.1} parent=5 // pred_check
        _
      $region10: #{plain_network_forward.1} parent=5 // pred_check_branch
        %339 = sbr.rel (%p336) target = $region12
      $region11: #{plain_network_forward.1} parent=5 // pred_region
        %s340 = ssub.s32 %s22, 1
        // Predicated region
        $region13: #{plain_network_forward.1} parent=11 // pred_check
          %p341 = pneg %p69
        $region14: #{plain_network_forward.1} parent=11 // pred_check_branch
          %343 = sbr.rel (%p341) target = $region16
        $region15: #{plain_network_forward.1} parent=11 // pred_region
          _
        $region16: #{plain_network_forward.1} parent=11 // pred_fallthru
          _
        // Predicated region
        $region17: #{plain_network_forward.1} parent=11 // pred_check
          %p344 = pneg %p90
        $region18: #{plain_network_forward.1} parent=11 // pred_check_branch
          %346 = sbr.rel (%p344) target = $region20
        $region19: #{plain_network_forward.1} parent=11 // pred_region
          _
        $region20: #{plain_network_forward.1} parent=11 // pred_fallthru
          _
        // Predicated region
        $region21: #{plain_network_forward.1} parent=11 // pred_check
          %p347 = pneg %p111
        $region22: #{plain_network_forward.1} parent=11 // pred_check_branch
          %349 = sbr.rel (%p347) target = $region24
        $region23: #{plain_network_forward.1} parent=11 // pred_region
          _
        $region24: #{plain_network_forward.1} parent=11 // pred_fallthru
          _
        // Predicated region
        $region25: #{plain_network_forward.1} parent=11 // pred_check
          %p350 = pneg %p132
        $region26: #{plain_network_forward.1} parent=11 // pred_check_branch
          %352 = sbr.rel (%p350) target = $region28
        $region27: #{plain_network_forward.1} parent=11 // pred_region
          _
        $region28: #{plain_network_forward.1} parent=11 // pred_fallthru
          _
        // Predicated region
        $region29: #{plain_network_forward.1} parent=11 // pred_check
          %p353 = pneg %p153
        $region30: #{plain_network_forward.1} parent=11 // pred_check_branch
          %355 = sbr.rel (%p353) target = $region32
        $region31: #{plain_network_forward.1} parent=11 // pred_region
          _
        $region32: #{plain_network_forward.1} parent=11 // pred_fallthru
          _
        // Predicated region
        $region33: #{plain_network_forward.1} parent=11 // pred_check
          %p356 = pneg %p174
        $region34: #{plain_network_forward.1} parent=11 // pred_check_branch
          %358 = sbr.rel (%p356) target = $region36
        $region35: #{plain_network_forward.1} parent=11 // pred_region
          _
        $region36: #{plain_network_forward.1} parent=11 // pred_fallthru
          _
        // Predicated region
        $region37: #{plain_network_forward.1} parent=11 // pred_check
          %p359 = pneg %p195
        $region38: #{plain_network_forward.1} parent=11 // pred_check_branch
          %361 = sbr.rel (%p359) target = $region40
        $region39: #{plain_network_forward.1} parent=11 // pred_region
          _
        $region40: #{plain_network_forward.1} parent=11 // pred_fallthru
          _
        // Predicated region
        $region41: #{plain_network_forward.1} parent=11 // pred_check
          %p362 = pneg %p216
        $region42: #{plain_network_forward.1} parent=11 // pred_check_branch
          %364 = sbr.rel (%p362) target = $region44
        $region43: #{plain_network_forward.1} parent=11 // pred_region
          _
        $region44: #{plain_network_forward.1} parent=11 // pred_fallthru
          _
        // Predicated region
        $region45: #{plain_network_forward.1} parent=11 // pred_check
          %p365 = pneg %p237
        $region46: #{plain_network_forward.1} parent=11 // pred_check_branch
          %367 = sbr.rel (%p365) target = $region48
        $region47: #{plain_network_forward.1} parent=11 // pred_region
          _
        $region48: #{plain_network_forward.1} parent=11 // pred_fallthru
          _
        // Predicated region
        $region49: #{plain_network_forward.1} parent=11 // pred_check
          %p368 = pneg %p258
        $region50: #{plain_network_forward.1} parent=11 // pred_check_branch
          %370 = sbr.rel (%p368) target = $region52
        $region51: #{plain_network_forward.1} parent=11 // pred_region
          _
        $region52: #{plain_network_forward.1} parent=11 // pred_fallthru
          _
        // Predicated region
        $region53: #{plain_network_forward.1} parent=11 // pred_check
          %p371 = pneg %p279
        $region54: #{plain_network_forward.1} parent=11 // pred_check_branch
          %373 = sbr.rel (%p371) target = $region56
        $region55: #{plain_network_forward.1} parent=11 // pred_region
          _
        $region56: #{plain_network_forward.1} parent=11 // pred_fallthru
          _
        // Predicated region
        $region57: #{plain_network_forward.1} parent=11 // pred_check
          %p374 = pneg %p300
        $region58: #{plain_network_forward.1} parent=11 // pred_check_branch
          %376 = sbr.rel (%p374) target = $region60
        $region59: #{plain_network_forward.1} parent=11 // pred_region
          _
        $region60: #{plain_network_forward.1} parent=11 // pred_fallthru
          _
      $region12: #{plain_network_forward.1} parent=5 // pred_fallthru
        _
      %p377 = scmp.lt.s32.totalorder %s22, 2
      // Predicated region
      $region61: #{plain_network_forward.1} parent=5 // pred_check
        %p378 = pneg %p377
      $region62: #{plain_network_forward.1} parent=5 // pred_check_branch
        %380 = sbr.rel (%p378) target = $region64
      $region63: #{plain_network_forward.1} parent=5 // pred_region
        // Predicated region
        $region65: #{plain_network_forward.1} parent=63 // pred_check
          %p381 = pneg %p42
        $region66: #{plain_network_forward.1} parent=63 // pred_check_branch
          %383 = sbr.rel (%p381) target = $region68
        $region67: #{plain_network_forward.1} parent=63 // pred_region
          %s384 = smul.u32 8, %s22
          %p385 = scmp.lt.s32.totalorder %s384, 15
          %s386 = scalar_select %p385, %s384, 15
          %s387 = smul.addr %s386, 2
          %s388 = smul.addr %s387, 8
          %s389 = scalar_lea.vmem %s0, %s388
          %s390 = smul.u32 8, %s22
        $region68: #{plain_network_forward.1} parent=63 // pred_fallthru
          _
      $region64: #{plain_network_forward.1} parent=5 // pred_fallthru
        _
      %p391 = scmp.le.s32.totalorder 1, %s22
      %p392 = scmp.lt.s32.totalorder %s22, 3
      %p393 = pnand %p391, %p392
      %p394 = pneg %p393
      // Predicated region
      $region69: #{plain_network_forward.1} parent=5 // pred_check
        _
      $region70: #{plain_network_forward.1} parent=5 // pred_check_branch
        %396 = sbr.rel (%p393) target = $region72
      $region71: #{plain_network_forward.1} parent=5 // pred_region
        %s397 = ssub.s32 %s22, 1
        %s398 = smul.u32 8, %s27
        %p399 = scmp.lt.s32.totalorder %s398, 15
        %s400 = scalar_select %p399, %s398, 15
        %s401 = smul.addr %s400, 2
        %s402 = smul.addr %s401, 8
        %s403 = scalar_lea.vmem %s0, %s402
        %p404 = pneg %p48
        %p405 = pneg %p45
        %p406 = pneg %p69
        %p407 = pneg %p66
        %p408 = pneg %p90
        %p409 = pneg %p87
        %p410 = pneg %p111
        %p411 = pneg %p108
        %p412 = pneg %p132
        %p413 = pneg %p129
        %p414 = pneg %p153
        %p415 = pneg %p150
        %p416 = pneg %p174
        %p417 = pneg %p171
        %p418 = pneg %p195
        %p419 = pneg %p192
        %p420 = pneg %p216
        %p421 = pneg %p213
        %p422 = pneg %p237
        %p423 = pneg %p234
        %p424 = pneg %p258
        %p425 = pneg %p255
        %p426 = pneg %p279
        %p427 = pneg %p276
        %p428 = pneg %p300
        %p429 = pneg %p297
        %p430 = pneg %p326
        %p431 = pneg %p323
        %s432 = sand.u32 %s313, 1
        %s433 = scalar_lea.sflag [#allocation6], %s432
        %s434 = sand.u32 %s313, 1
        %s435 = smul.addr %s434, 8
        %s436 = scalar_lea.vmem [#allocation5], %s435
        %s437 = smul.u32 8, %s27
        %p438 = scmp.lt.s32.totalorder %s437, 15
        %s439 = scalar_select %p438, %s437, 15
        %s440 = smul.addr %s439, 2
        %s441 = smul.addr %s440, 8
        %s442 = scalar_lea.vmem %s0, %s441
        %s443 = smul.u32 8, %s27
        %vm445 = vcmask 516096
        %446 = vst.msk [vmem:[#allocation2] sm:$0x1] %vm445, 0.0
        %447 = vst.msk [vmem:[#allocation2 + $0x18] sm:$0x1] %vm445, 0.0
        %448 = vst.msk [vmem:[#allocation2 + $0x30] sm:$0x1] %vm445, 0.0
        %449 = vst.msk [vmem:[#allocation2 + $0x48] sm:$0x1] %vm445, 0.0
        %450 = vst.msk [vmem:[#allocation2 + $0x60] sm:$0x1] %vm445, 0.0
        %451 = vst.msk [vmem:[#allocation2 + $0x78] sm:$0x1] %vm445, 0.0
        %452 = vst.msk [vmem:[#allocation2 + $0x90] sm:$0x1] %vm445, 0.0
        %453 = vst.msk [vmem:[#allocation2 + $0xa8] sm:$0x1] %vm445, 0.0
        %454 = vst.msk [vmem:[#allocation2 + $0x11] sm:$0x1] %vm445, 0.0
        %455 = vst.msk [vmem:[#allocation2 + $0x29] sm:$0x1] %vm445, 0.0
        %456 = vst.msk [vmem:[#allocation2 + $0x41] sm:$0x1] %vm445, 0.0
        %457 = vst.msk [vmem:[#allocation2 + $0x59] sm:$0x1] %vm445, 0.0
        %458 = vst.msk [vmem:[#allocation2 + $0x71] sm:$0x1] %vm445, 0.0
        %459 = vst.msk [vmem:[#allocation2 + $0x89] sm:$0x1] %vm445, 0.0
        %460 = vst.msk [vmem:[#allocation2 + $0xa1] sm:$0x1] %vm445, 0.0
        %461 = vst.msk [vmem:[#allocation2 + $0xb9] sm:$0x1] %vm445, 0.0
        %v462 = vld [vmem:[%s442] sm:$0xff]
        %v463 = vld [vmem:[%s442 + $0x8] sm:$0xff]
        %v464 = vld [vmem:[%s442 + $0x10] sm:$0xff]
        %v465 = vld [vmem:[%s442 + $0x18] sm:$0xff]
        %v466 = vld [vmem:[%s442 + $0x20] sm:$0xff]
        %v467 = vld [vmem:[%s442 + $0x28] sm:$0xff]
        %v468 = vld [vmem:[%s442 + $0x30] sm:$0xff]
        %v469 = vld [vmem:[%s442 + $0x38] sm:$0xff]
        %v470 = vld [vmem:[%s442 + $0x40] sm:$0xff]
        %v471 = vld [vmem:[%s442 + $0x48] sm:$0xff]
        %v472 = vld [vmem:[%s442 + $0x50] sm:$0xff]
        %v473 = vld [vmem:[%s442 + $0x58] sm:$0xff]
        %v474 = vld [vmem:[%s442 + $0x60] sm:$0xff]
        %v475 = vld [vmem:[%s442 + $0x68] sm:$0xff]
        %v476 = vld [vmem:[%s442 + $0x70] sm:$0xff]
        %v477 = vld [vmem:[%s442 + $0x78] sm:$0xff]
        %vm478 = vcmask 523264
        %479 = vst.msk [vmem:[#allocation2 + $0x1] sm:$0xff] %vm478, %v462
        %480 = vst.msk [vmem:[#allocation2 + $0x9] sm:$0xff] %vm478, %v463
        %481 = vst.msk [vmem:[#allocation2 + $0x19] sm:$0xff] %vm478, %v464
        %482 = vst.msk [vmem:[#allocation2 + $0x21] sm:$0xff] %vm478, %v465
        %483 = vst.msk [vmem:[#allocation2 + $0x31] sm:$0xff] %vm478, %v466
        %484 = vst.msk [vmem:[#allocation2 + $0x39] sm:$0xff] %vm478, %v467
        %485 = vst.msk [vmem:[#allocation2 + $0x49] sm:$0xff] %vm478, %v468
        %486 = vst.msk [vmem:[#allocation2 + $0x51] sm:$0xff] %vm478, %v469
        %487 = vst.msk [vmem:[#allocation2 + $0x61] sm:$0xff] %vm478, %v470
        %488 = vst.msk [vmem:[#allocation2 + $0x69] sm:$0xff] %vm478, %v471
        %489 = vst.msk [vmem:[#allocation2 + $0x79] sm:$0xff] %vm478, %v472
        %490 = vst.msk [vmem:[#allocation2 + $0x81] sm:$0xff] %vm478, %v473
        %491 = vst.msk [vmem:[#allocation2 + $0x91] sm:$0xff] %vm478, %v474
        %492 = vst.msk [vmem:[#allocation2 + $0x99] sm:$0xff] %vm478, %v475
        %493 = vst.msk [vmem:[#allocation2 + $0xa9] sm:$0xff] %vm478, %v476
        %494 = vst.msk [vmem:[#allocation2 + $0xb1] sm:$0xff] %vm478, %v477
        %v495 = vld [vmem:[#allocation2] sm:$0xff]
        %v496 = vld [vmem:[#allocation2 + $0x8] sm:$0xff]
        %v497 = vld [vmem:[#allocation2 + $0x18] sm:$0xff]
        %v498 = vld [vmem:[#allocation2 + $0x20] sm:$0xff]
        %v499 = vld [vmem:[#allocation2 + $0x30] sm:$0xff]
        %v500 = vld [vmem:[#allocation2 + $0x38] sm:$0xff]
        %v501 = vld [vmem:[#allocation2 + $0x48] sm:$0xff]
        %v502 = vld [vmem:[#allocation2 + $0x50] sm:$0xff]
        %v503 = vld [vmem:[#allocation2 + $0x60] sm:$0xff]
        %v504 = vld [vmem:[#allocation2 + $0x68] sm:$0xff]
        %v505 = vld [vmem:[#allocation2 + $0x78] sm:$0xff]
        %v506 = vld [vmem:[#allocation2 + $0x80] sm:$0xff]
        %v507 = vld [vmem:[#allocation2 + $0x90] sm:$0xff]
        %v508 = vld [vmem:[#allocation2 + $0x98] sm:$0xff]
        %v509 = vld [vmem:[#allocation2 + $0xa8] sm:$0xff]
        %v510 = vld [vmem:[#allocation2 + $0xb0] sm:$0xff]
        %v511 = vpack.c.bf16 %v496, %v495
        %v512 = vpack.c.bf16 %v498, %v497
        %v513 = vpack.c.bf16 %v500, %v499
        %v514 = vpack.c.bf16 %v502, %v501
        %v515 = vpack.c.bf16 %v504, %v503
        %v516 = vpack.c.bf16 %v506, %v505
        %v517 = vpack.c.bf16 %v508, %v507
        %v518 = vpack.c.bf16 %v510, %v509
        %v519 = vld [vmem:[%s1] sm:$0xf]
        %v520 = vld [vmem:[%s1 + $0x4] sm:$0xf]
        %v521 = vld [vmem:[%s1 + $0x8] sm:$0xf]
        %v522 = vld [vmem:[%s1 + $0xc] sm:$0xf]
        %v523 = vld [vmem:[%s1 + $0x10] sm:$0xf]
        %v524 = vld [vmem:[%s1 + $0x14] sm:$0xf]
        %v525 = vld [vmem:[%s1 + $0x18] sm:$0xf]
        %v526 = vld [vmem:[%s1 + $0x1c] sm:$0xf]
        %v527 = vld [vmem:[#allocation2 + $0x1] sm:$0xff]
        %v528 = vld [vmem:[#allocation2 + $0x9] sm:$0xff]
        %v529 = vld [vmem:[#allocation2 + $0x19] sm:$0xff]
        %v530 = vld [vmem:[#allocation2 + $0x21] sm:$0xff]
        %v531 = vld [vmem:[#allocation2 + $0x31] sm:$0xff]
        %v532 = vld [vmem:[#allocation2 + $0x39] sm:$0xff]
        %v533 = vld [vmem:[#allocation2 + $0x49] sm:$0xff]
        %v534 = vld [vmem:[#allocation2 + $0x51] sm:$0xff]
        %v535 = vld [vmem:[#allocation2 + $0x61] sm:$0xff]
        %v536 = vld [vmem:[#allocation2 + $0x69] sm:$0xff]
        %v537 = vld [vmem:[#allocation2 + $0x79] sm:$0xff]
        %v538 = vld [vmem:[#allocation2 + $0x81] sm:$0xff]
        %v539 = vld [vmem:[#allocation2 + $0x91] sm:$0xff]
        %v540 = vld [vmem:[#allocation2 + $0x99] sm:$0xff]
        %v541 = vld [vmem:[#allocation2 + $0xa9] sm:$0xff]
        %v542 = vld [vmem:[#allocation2 + $0xb1] sm:$0xff]
        %v543 = vpack.c.bf16 %v528, %v527
        %v544 = vpack.c.bf16 %v530, %v529
        %v545 = vpack.c.bf16 %v532, %v531
        %v546 = vpack.c.bf16 %v534, %v533
        %v547 = vpack.c.bf16 %v536, %v535
        %v548 = vpack.c.bf16 %v538, %v537
        %v549 = vpack.c.bf16 %v540, %v539
        %v550 = vpack.c.bf16 %v542, %v541
        %s551 = scalar_lea.vmem %s1, 32
        %v552 = vld [vmem:[%s551] sm:$0xf]
        %v553 = vld [vmem:[%s551 + $0x4] sm:$0xf]
        %v554 = vld [vmem:[%s551 + $0x8] sm:$0xf]
        %v555 = vld [vmem:[%s551 + $0xc] sm:$0xf]
        %v556 = vld [vmem:[%s551 + $0x10] sm:$0xf]
        %v557 = vld [vmem:[%s551 + $0x14] sm:$0xf]
        %v558 = vld [vmem:[%s551 + $0x18] sm:$0xf]
        %v559 = vld [vmem:[%s551 + $0x1c] sm:$0xf]
        %v568 = vunpack.c.l.b16 %v552
        %v569 = vunpack.c.l.b16 %v553
        %v570 = vunpack.c.l.b16 %v554
        %v571 = vunpack.c.l.b16 %v555
        %v572 = vunpack.c.l.b16 %v556
        %v573 = vunpack.c.l.b16 %v557
        %v574 = vunpack.c.l.b16 %v558
        %v575 = vunpack.c.l.b16 %v559
        %v576 = vpack.c.b16 %v569, %v568
        %v577 = vpack.c.b16 %v571, %v570
        %v578 = vpack.c.b16 %v573, %v572
        %v579 = vpack.c.b16 %v575, %v574
        %v585 = vsel %vm478, %v543, 0
        %v588 = vsel %vm478, %v544, 0
        %v591 = vsel %vm478, %v545, 0
        %v594 = vsel %vm478, %v546, 0
        %v597 = vsel %vm478, %v547, 0
        %v600 = vsel %vm478, %v548, 0
        %v603 = vsel %vm478, %v549, 0
        %v606 = vsel %vm478, %v550, 0
        %608 = vmatprep.subr.bf16.mxu0 0
        %609 = vmatpush1.bf16.msra.mxu0 %v576
        %610 = vmatprep.subr.bf16.mxu0 0
        %611 = vmatpush1.bf16.msra.mxu0 %v577
        %612 = vmatprep.subr.bf16.mxu0 0
        %613 = vmatpush1.bf16.msra.mxu0 %v578
        %614 = vmatprep.subr.bf16.mxu0 0
        %615 = vmatpush1.bf16.msra.mxu0 %v579
        %616 = vmatprep.subr.bf16.mxu0 0
        %617 = vmatpush1.bf16.msra.mxu0 0
        %618 = vmatprep.subr.bf16.mxu0 0
        %619 = vmatpush1.bf16.msra.mxu0 0
        %620 = vmatprep.subr.bf16.mxu0 0
        %621 = vmatpush1.bf16.msra.mxu0 0
        %622 = vmatprep.subr.bf16.mxu0 0
        %623 = vmatpush1.bf16.msra.mxu0 0
        %624 = vmatprep.subr.bf16.mxu0 0
        %625 = vmatpush1.bf16.msra.mxu0 0
        %626 = vmatprep.subr.bf16.mxu0 0
        %627 = vmatpush1.bf16.msra.mxu0 0
        %628 = vmatprep.subr.bf16.mxu0 0
        %629 = vmatpush1.bf16.msra.mxu0 0
        %630 = vmatprep.subr.bf16.mxu0 0
        %631 = vmatpush1.bf16.msra.mxu0 0
        %632 = vmatprep.subr.bf16.mxu0 0
        %633 = vmatpush1.bf16.msra.mxu0 0
        %634 = vmatprep.subr.bf16.mxu0 0
        %635 = vmatpush1.bf16.msra.mxu0 0
        %636 = vmatprep.subr.bf16.mxu0 0
        %637 = vmatpush1.bf16.msra.mxu0 0
        %638 = vmatprep.subr.bf16.mxu0 0
        %639 = vmatpush1.bf16.msra.mxu0 0
        %640 = vmatprep.mubr.bf16.mxu0 0
        %641 = vmatmul.mubr.bf16.gmra.mrb[0].mxu0 %v585
        %v642 = vpop.f32.mrb[0].mxu0
        %v643 = vadd.f32 0.0, %v642
        %v644 = vpop.f32.mrb[0].mxu0
        %v645 = vpop.f32.mrb[0].mxu0
        %v646 = vadd.f32 0.0, %v645
        %v647 = vpop.f32.mrb[0].mxu0
        %648 = vmatprep.mubr.bf16.mxu0 0
        %649 = vmatmul.mubr.bf16.gmra.mrb[0].mxu0 %v588
        %v650 = vpop.f32.mrb[0].mxu0
        %v651 = vadd.f32 0.0, %v650
        %v652 = vpop.f32.mrb[0].mxu0
        %v653 = vpop.f32.mrb[0].mxu0
        %v654 = vadd.f32 0.0, %v653
        %v655 = vpop.f32.mrb[0].mxu0
        %656 = vmatprep.mubr.bf16.mxu0 0
        %657 = vmatmul.mubr.bf16.gmra.mrb[0].mxu0 %v591
        %v658 = vpop.f32.mrb[0].mxu0
        %v659 = vadd.f32 0.0, %v658
        %v660 = vpop.f32.mrb[0].mxu0
        %v661 = vpop.f32.mrb[0].mxu0
        %v662 = vadd.f32 0.0, %v661
        %v663 = vpop.f32.mrb[0].mxu0
        %664 = vmatprep.mubr.bf16.mxu0 0
        %665 = vmatmul.mubr.bf16.gmra.mrb[0].mxu0 %v594
        %v666 = vpop.f32.mrb[0].mxu0
        %v667 = vadd.f32 0.0, %v666
        %v668 = vpop.f32.mrb[0].mxu0
        %v669 = vpop.f32.mrb[0].mxu0
        %v670 = vadd.f32 0.0, %v669
        %v671 = vpop.f32.mrb[0].mxu0
        %672 = vmatprep.mubr.bf16.mxu0 0
        %673 = vmatmul.mubr.bf16.gmra.mrb[0].mxu0 %v597
        %v674 = vpop.f32.mrb[0].mxu0
        %v675 = vadd.f32 0.0, %v674
        %v676 = vpop.f32.mrb[0].mxu0
        %v677 = vpop.f32.mrb[0].mxu0
        %v678 = vadd.f32 0.0, %v677
        %v679 = vpop.f32.mrb[0].mxu0
        %680 = vmatprep.mubr.bf16.mxu0 0
        %681 = vmatmul.mubr.bf16.gmra.mrb[0].mxu0 %v600
        %v682 = vpop.f32.mrb[0].mxu0
        %v683 = vadd.f32 0.0, %v682
        %v684 = vpop.f32.mrb[0].mxu0
        %v685 = vpop.f32.mrb[0].mxu0
        %v686 = vadd.f32 0.0, %v685
        %v687 = vpop.f32.mrb[0].mxu0
        %688 = vmatprep.mubr.bf16.mxu0 0
        %689 = vmatmul.mubr.bf16.gmra.mrb[0].mxu0 %v603
        %v690 = vpop.f32.mrb[0].mxu0
        %v691 = vadd.f32 0.0, %v690
        %v692 = vpop.f32.mrb[0].mxu0
        %v693 = vpop.f32.mrb[0].mxu0
        %v694 = vadd.f32 0.0, %v693
        %v695 = vpop.f32.mrb[0].mxu0
        %696 = vmatprep.mubr.bf16.mxu0 0
        %697 = vmatmul.mubr.bf16.gmra.mrb[0].mxu0 %v606
        %v698 = vpop.f32.mrb[0].mxu0
        %v699 = vadd.f32 0.0, %v698
        %v700 = vpop.f32.mrb[0].mxu0
        %v701 = vpop.f32.mrb[0].mxu0
        %v702 = vadd.f32 0.0, %v701
        %v703 = vpop.f32.mrb[0].mxu0
        %704 = vdwg.mxu0
        %v713 = vunpack.c.l.b16 %v519
        %v714 = vunpack.c.l.b16 %v520
        %v715 = vunpack.c.l.b16 %v521
        %v716 = vunpack.c.l.b16 %v522
        %v717 = vunpack.c.l.b16 %v523
        %v718 = vunpack.c.l.b16 %v524
        %v719 = vunpack.c.l.b16 %v525
        %v720 = vunpack.c.l.b16 %v526
        %v721 = vpack.c.b16 %v714, %v713
        %v722 = vpack.c.b16 %v716, %v715
        %v723 = vpack.c.b16 %v718, %v717
        %v724 = vpack.c.b16 %v720, %v719
        %v730 = vsel %vm478, %v511, 0
        %v733 = vsel %vm478, %v512, 0
        %v736 = vsel %vm478, %v513, 0
        %v739 = vsel %vm478, %v514, 0
        %v742 = vsel %vm478, %v515, 0
        %v745 = vsel %vm478, %v516, 0
        %v748 = vsel %vm478, %v517, 0
        %v751 = vsel %vm478, %v518, 0
        %753 = vmatprep.subr.bf16.mxu0 0
        %754 = vmatpush1.bf16.msra.mxu0 %v721
        %755 = vmatprep.subr.bf16.mxu0 0
        %756 = vmatpush1.bf16.msra.mxu0 %v722
        %757 = vmatprep.subr.bf16.mxu0 0
        %758 = vmatpush1.bf16.msra.mxu0 %v723
        %759 = vmatprep.subr.bf16.mxu0 0
        %760 = vmatpush1.bf16.msra.mxu0 %v724
        %761 = vmatprep.subr.bf16.mxu0 0
        %762 = vmatpush1.bf16.msra.mxu0 0
        %763 = vmatprep.subr.bf16.mxu0 0
        %764 = vmatpush1.bf16.msra.mxu0 0
        %765 = vmatprep.subr.bf16.mxu0 0
        %766 = vmatpush1.bf16.msra.mxu0 0
        %767 = vmatprep.subr.bf16.mxu0 0
        %768 = vmatpush1.bf16.msra.mxu0 0
        %769 = vmatprep.subr.bf16.mxu0 0
        %770 = vmatpush1.bf16.msra.mxu0 0
        %771 = vmatprep.subr.bf16.mxu0 0
        %772 = vmatpush1.bf16.msra.mxu0 0
        %773 = vmatprep.subr.bf16.mxu0 0
        %774 = vmatpush1.bf16.msra.mxu0 0
        %775 = vmatprep.subr.bf16.mxu0 0
        %776 = vmatpush1.bf16.msra.mxu0 0
        %777 = vmatprep.subr.bf16.mxu0 0
        %778 = vmatpush1.bf16.msra.mxu0 0
        %779 = vmatprep.subr.bf16.mxu0 0
        %780 = vmatpush1.bf16.msra.mxu0 0
        %781 = vmatprep.subr.bf16.mxu0 0
        %782 = vmatpush1.bf16.msra.mxu0 0
        %783 = vmatprep.subr.bf16.mxu0 0
        %784 = vmatpush1.bf16.msra.mxu0 0
        %785 = vmatprep.mubr.bf16.mxu0 0
        %786 = vmatmul.mubr.bf16.gmra.mrb[0].mxu0 %v730
        %v787 = vpop.f32.mrb[0].mxu0
        %v788 = vadd.f32 %v643, %v787
        %v789 = vpop.f32.mrb[0].mxu0
        %v790 = vpop.f32.mrb[0].mxu0
        %v791 = vadd.f32 %v646, %v790
        %v792 = vpop.f32.mrb[0].mxu0
        %793 = vmatprep.mubr.bf16.mxu0 0
        %794 = vmatmul.mubr.bf16.gmra.mrb[0].mxu0 %v733
        %v795 = vpop.f32.mrb[0].mxu0
        %v796 = vadd.f32 %v651, %v795
        %v797 = vpop.f32.mrb[0].mxu0
        %v798 = vpop.f32.mrb[0].mxu0
        %v799 = vadd.f32 %v654, %v798
        %v800 = vpop.f32.mrb[0].mxu0
        %801 = vmatprep.mubr.bf16.mxu0 0
        %802 = vmatmul.mubr.bf16.gmra.mrb[0].mxu0 %v736
        %v803 = vpop.f32.mrb[0].mxu0
        %v804 = vadd.f32 %v659, %v803
        %v805 = vpop.f32.mrb[0].mxu0
        %v806 = vpop.f32.mrb[0].mxu0
        %v807 = vadd.f32 %v662, %v806
        %v808 = vpop.f32.mrb[0].mxu0
        %809 = vmatprep.mubr.bf16.mxu0 0
        %810 = vmatmul.mubr.bf16.gmra.mrb[0].mxu0 %v739
        %v811 = vpop.f32.mrb[0].mxu0
        %v812 = vadd.f32 %v667, %v811
        %v813 = vpop.f32.mrb[0].mxu0
        %v814 = vpop.f32.mrb[0].mxu0
        %v815 = vadd.f32 %v670, %v814
        %v816 = vpop.f32.mrb[0].mxu0
        %817 = vmatprep.mubr.bf16.mxu0 0
        %818 = vmatmul.mubr.bf16.gmra.mrb[0].mxu0 %v742
        %v819 = vpop.f32.mrb[0].mxu0
        %v820 = vadd.f32 %v675, %v819
        %v821 = vpop.f32.mrb[0].mxu0
        %v822 = vpop.f32.mrb[0].mxu0
        %v823 = vadd.f32 %v678, %v822
        %v824 = vpop.f32.mrb[0].mxu0
        %825 = vmatprep.mubr.bf16.mxu0 0
        %826 = vmatmul.mubr.bf16.gmra.mrb[0].mxu0 %v745
        %v827 = vpop.f32.mrb[0].mxu0
        %v828 = vadd.f32 %v683, %v827
        %v829 = vpop.f32.mrb[0].mxu0
        %v830 = vpop.f32.mrb[0].mxu0
        %v831 = vadd.f32 %v686, %v830
        %v832 = vpop.f32.mrb[0].mxu0
        %833 = vmatprep.mubr.bf16.mxu0 0
        %834 = vmatmul.mubr.bf16.gmra.mrb[0].mxu0 %v748
        %v835 = vpop.f32.mrb[0].mxu0
        %v836 = vadd.f32 %v691, %v835
        %v837 = vpop.f32.mrb[0].mxu0
        %v838 = vpop.f32.mrb[0].mxu0
        %v839 = vadd.f32 %v694, %v838
        %v840 = vpop.f32.mrb[0].mxu0
        %841 = vmatprep.mubr.bf16.mxu0 0
        %842 = vmatmul.mubr.bf16.gmra.mrb[0].mxu0 %v751
        %v843 = vpop.f32.mrb[0].mxu0
        %v844 = vadd.f32 %v699, %v843
        %v845 = vpop.f32.mrb[0].mxu0
        %v846 = vpop.f32.mrb[0].mxu0
        %v847 = vadd.f32 %v702, %v846
        %v848 = vpop.f32.mrb[0].mxu0
        %849 = vdwg.mxu0
        %v850 = vld [vmem:[#allocation2 + $0x2] sm:$0xff]
        %v851 = vld [vmem:[#allocation2 + $0xa] sm:$0xff]
        %v852 = vld [vmem:[#allocation2 + $0x1a] sm:$0xff]
        %v853 = vld [vmem:[#allocation2 + $0x22] sm:$0xff]
        %v854 = vld [vmem:[#allocation2 + $0x32] sm:$0xff]
        %v855 = vld [vmem:[#allocation2 + $0x3a] sm:$0xff]
        %v856 = vld [vmem:[#allocation2 + $0x4a] sm:$0xff]
        %v857 = vld [vmem:[#allocation2 + $0x52] sm:$0xff]
        %v858 = vld [vmem:[#allocation2 + $0x62] sm:$0xff]
        %v859 = vld [vmem:[#allocation2 + $0x6a] sm:$0xff]
        %v860 = vld [vmem:[#allocation2 + $0x7a] sm:$0xff]
        %v861 = vld [vmem:[#allocation2 + $0x82] sm:$0xff]
        %v862 = vld [vmem:[#allocation2 + $0x92] sm:$0xff]
        %v863 = vld [vmem:[#allocation2 + $0x9a] sm:$0xff]
        %v864 = vld [vmem:[#allocation2 + $0xaa] sm:$0xff]
        %v865 = vld [vmem:[#allocation2 + $0xb2] sm:$0xff]
        %v866 = vpack.c.bf16 %v851, %v850
        %v867 = vpack.c.bf16 %v853, %v852
        %v868 = vpack.c.bf16 %v855, %v854
        %v869 = vpack.c.bf16 %v857, %v856
        %v870 = vpack.c.bf16 %v859, %v858
        %v871 = vpack.c.bf16 %v861, %v860
        %v872 = vpack.c.bf16 %v863, %v862
        %v873 = vpack.c.bf16 %v865, %v864
        %s874 = scalar_lea.vmem %s1, 64
        %v875 = vld [vmem:[%s874] sm:$0xf]
        %v876 = vld [vmem:[%s874 + $0x4] sm:$0xf]
        %v877 = vld [vmem:[%s874 + $0x8] sm:$0xf]
        %v878 = vld [vmem:[%s874 + $0xc] sm:$0xf]
        %v879 = vld [vmem:[%s874 + $0x10] sm:$0xf]
        %v880 = vld [vmem:[%s874 + $0x14] sm:$0xf]
        %v881 = vld [vmem:[%s874 + $0x18] sm:$0xf]
        %v882 = vld [vmem:[%s874 + $0x1c] sm:$0xf]
        %v891 = vunpack.c.l.b16 %v875
        %v892 = vunpack.c.l.b16 %v876
        %v893 = vunpack.c.l.b16 %v877
        %v894 = vunpack.c.l.b16 %v878
        %v895 = vunpack.c.l.b16 %v879
        %v896 = vunpack.c.l.b16 %v880
        %v897 = vunpack.c.l.b16 %v881
        %v898 = vunpack.c.l.b16 %v882
        %v899 = vpack.c.b16 %v892, %v891
        %v900 = vpack.c.b16 %v894, %v893
        %v901 = vpack.c.b16 %v896, %v895
        %v902 = vpack.c.b16 %v898, %v897
        %v908 = vsel %vm478, %v866, 0
        %v911 = vsel %vm478, %v867, 0
        %v914 = vsel %vm478, %v868, 0
        %v917 = vsel %vm478, %v869, 0
        %v920 = vsel %vm478, %v870, 0
        %v923 = vsel %vm478, %v871, 0
        %v926 = vsel %vm478, %v872, 0
        %v929 = vsel %vm478, %v873, 0
        %931 = vmatprep.subr.bf16.mxu0 0
        %932 = vmatpush1.bf16.msra.mxu0 %v899
        %933 = vmatprep.subr.bf16.mxu0 0
        %934 = vmatpush1.bf16.msra.mxu0 %v900
        %935 = vmatprep.subr.bf16.mxu0 0
        %936 = vmatpush1.bf16.msra.mxu0 %v901
        %937 = vmatprep.subr.bf16.mxu0 0
        %938 = vmatpush1.bf16.msra.mxu0 %v902
        %939 = vmatprep.subr.bf16.mxu0 0
        %940 = vmatpush1.bf16.msra.mxu0 0
        %941 = vmatprep.subr.bf16.mxu0 0
        %942 = vmatpush1.bf16.msra.mxu0 0
        %943 = vmatprep.subr.bf16.mxu0 0
        %944 = vmatpush1.bf16.msra.mxu0 0
        %945 = vmatprep.subr.bf16.mxu0 0
        %946 = vmatpush1.bf16.msra.mxu0 0
        %947 = vmatprep.subr.bf16.mxu0 0
        %948 = vmatpush1.bf16.msra.mxu0 0
        %949 = vmatprep.subr.bf16.mxu0 0
        %950 = vmatpush1.bf16.msra.mxu0 0
        %951 = vmatprep.subr.bf16.mxu0 0
        %952 = vmatpush1.bf16.msra.mxu0 0
        %953 = vmatprep.subr.bf16.mxu0 0
        %954 = vmatpush1.bf16.msra.mxu0 0
        %955 = vmatprep.subr.bf16.mxu0 0
        %956 = vmatpush1.bf16.msra.mxu0 0
        %957 = vmatprep.subr.bf16.mxu0 0
        %958 = vmatpush1.bf16.msra.mxu0 0
        %959 = vmatprep.subr.bf16.mxu0 0
        %960 = vmatpush1.bf16.msra.mxu0 0
        %961 = vmatprep.subr.bf16.mxu0 0
        %962 = vmatpush1.bf16.msra.mxu0 0
        %963 = vmatprep.mubr.bf16.mxu0 0
        %964 = vmatmul.mubr.bf16.gmra.mrb[0].mxu0 %v908
        %v965 = vpop.f32.mrb[0].mxu0
        %v966 = vadd.f32 0.0, %v965
        %v967 = vpop.f32.mrb[0].mxu0
        %v968 = vpop.f32.mrb[0].mxu0
        %v969 = vadd.f32 0.0, %v968
        %v970 = vpop.f32.mrb[0].mxu0
        %971 = vmatprep.mubr.bf16.mxu0 0
        %972 = vmatmul.mubr.bf16.gmra.mrb[0].mxu0 %v911
        %v973 = vpop.f32.mrb[0].mxu0
        %v974 = vadd.f32 0.0, %v973
        %v975 = vpop.f32.mrb[0].mxu0
        %v976 = vpop.f32.mrb[0].mxu0
        %v977 = vadd.f32 0.0, %v976
        %v978 = vpop.f32.mrb[0].mxu0
        %979 = vmatprep.mubr.bf16.mxu0 0
        %980 = vmatmul.mubr.bf16.gmra.mrb[0].mxu0 %v914
        %v981 = vpop.f32.mrb[0].mxu0
        %v982 = vadd.f32 0.0, %v981
        %v983 = vpop.f32.mrb[0].mxu0
        %v984 = vpop.f32.mrb[0].mxu0
        %v985 = vadd.f32 0.0, %v984
        %v986 = vpop.f32.mrb[0].mxu0
        %987 = vmatprep.mubr.bf16.mxu0 0
        %988 = vmatmul.mubr.bf16.gmra.mrb[0].mxu0 %v917
        %v989 = vpop.f32.mrb[0].mxu0
        %v990 = vadd.f32 0.0, %v989
        %v991 = vpop.f32.mrb[0].mxu0
        %v992 = vpop.f32.mrb[0].mxu0
        %v993 = vadd.f32 0.0, %v992
        %v994 = vpop.f32.mrb[0].mxu0
        %995 = vmatprep.mubr.bf16.mxu0 0
        %996 = vmatmul.mubr.bf16.gmra.mrb[0].mxu0 %v920
        %v997 = vpop.f32.mrb[0].mxu0
        %v998 = vadd.f32 0.0, %v997
        %v999 = vpop.f32.mrb[0].mxu0
        %v1000 = vpop.f32.mrb[0].mxu0
        %v1001 = vadd.f32 0.0, %v1000
        %v1002 = vpop.f32.mrb[0].mxu0
        %1003 = vmatprep.mubr.bf16.mxu0 0
        %1004 = vmatmul.mubr.bf16.gmra.mrb[0].mxu0 %v923
        %v1005 = vpop.f32.mrb[0].mxu0
        %v1006 = vadd.f32 0.0, %v1005
        %v1007 = vpop.f32.mrb[0].mxu0
        %v1008 = vpop.f32.mrb[0].mxu0
        %v1009 = vadd.f32 0.0, %v1008
        %v1010 = vpop.f32.mrb[0].mxu0
        %1011 = vmatprep.mubr.bf16.mxu0 0
        %1012 = vmatmul.mubr.bf16.gmra.mrb[0].mxu0 %v926
        %v1013 = vpop.f32.mrb[0].mxu0
        %v1014 = vadd.f32 0.0, %v1013
        %v1015 = vpop.f32.mrb[0].mxu0
        %v1016 = vpop.f32.mrb[0].mxu0
        %v1017 = vadd.f32 0.0, %v1016
        %v1018 = vpop.f32.mrb[0].mxu0
        %1019 = vmatprep.mubr.bf16.mxu0 0
        %1020 = vmatmul.mubr.bf16.gmra.mrb[0].mxu0 %v929
        %v1021 = vpop.f32.mrb[0].mxu0
        %v1022 = vadd.f32 0.0, %v1021
        %v1023 = vpop.f32.mrb[0].mxu0
        %v1024 = vpop.f32.mrb[0].mxu0
        %v1025 = vadd.f32 0.0, %v1024
        %v1026 = vpop.f32.mrb[0].mxu0
        %1027 = vdwg.mxu0
        %v1028 = vadd.f32 %v788, %v966
        %v1029 = vadd.f32 %v791, %v969
        %v1030 = vadd.f32 %v796, %v974
        %v1031 = vadd.f32 %v799, %v977
        %v1032 = vadd.f32 %v804, %v982
        %v1033 = vadd.f32 %v807, %v985
        %v1034 = vadd.f32 %v812, %v990
        %v1035 = vadd.f32 %v815, %v993
        %v1036 = vadd.f32 %v820, %v998
        %v1037 = vadd.f32 %v823, %v1001
        %v1038 = vadd.f32 %v828, %v1006
        %v1039 = vadd.f32 %v831, %v1009
        %v1040 = vadd.f32 %v836, %v1014
        %v1041 = vadd.f32 %v839, %v1017
        %v1042 = vadd.f32 %v844, %v1022
        %v1043 = vadd.f32 %v847, %v1025
        %v1044 = vld [vmem:[%s2] sm:$0x1]
        %v1046 = vlaneseq
        %v1047 = vshrl.u32 %v1046, 7
        %v1048 = vsub.s32 0, %v1047
        %v1049 = vrot.slane %v1044, %v1048
        %v1051 = vadd.f32 %v1028, %v1049
        %v1052 = vadd.f32 %v1029, %v1049
        %v1053 = vadd.f32 %v1030, %v1049
        %v1054 = vadd.f32 %v1031, %v1049
        %v1055 = vadd.f32 %v1032, %v1049
        %v1056 = vadd.f32 %v1033, %v1049
        %v1057 = vadd.f32 %v1034, %v1049
        %v1058 = vadd.f32 %v1035, %v1049
        %v1059 = vadd.f32 %v1036, %v1049
        %v1060 = vadd.f32 %v1037, %v1049
        %v1061 = vadd.f32 %v1038, %v1049
        %v1062 = vadd.f32 %v1039, %v1049
        %v1063 = vadd.f32 %v1040, %v1049
        %v1064 = vadd.f32 %v1041, %v1049
        %v1065 = vadd.f32 %v1042, %v1049
        %v1066 = vadd.f32 %v1043, %v1049
        %v1067 = vmax.f32 %v1051, 0.0
        %v1068 = vmax.f32 %v1052, 0.0
        %v1069 = vmax.f32 %v1053, 0.0
        %v1070 = vmax.f32 %v1054, 0.0
        %v1071 = vmax.f32 %v1055, 0.0
        %v1072 = vmax.f32 %v1056, 0.0
        %v1073 = vmax.f32 %v1057, 0.0
        %v1074 = vmax.f32 %v1058, 0.0
        %v1075 = vmax.f32 %v1059, 0.0
        %v1076 = vmax.f32 %v1060, 0.0
        %v1077 = vmax.f32 %v1061, 0.0
        %v1078 = vmax.f32 %v1062, 0.0
        %v1079 = vmax.f32 %v1063, 0.0
        %v1080 = vmax.f32 %v1064, 0.0
        %v1081 = vmax.f32 %v1065, 0.0
        %v1082 = vmax.f32 %v1066, 0.0
        %v1083 = vld [vmem:[%s3] sm:$0x1]
        %v1085 = vlaneseq
        %v1086 = vshrl.u32 %v1085, 7
        %v1087 = vsub.s32 0, %v1086
        %v1088 = vrot.slane %v1083, %v1087
        %v1090 = vmul.f32 %v1067, %v1088
        %v1091 = vmul.f32 %v1068, %v1088
        %v1092 = vmul.f32 %v1069, %v1088
        %v1093 = vmul.f32 %v1070, %v1088
        %v1094 = vmul.f32 %v1071, %v1088
        %v1095 = vmul.f32 %v1072, %v1088
        %v1096 = vmul.f32 %v1073, %v1088
        %v1097 = vmul.f32 %v1074, %v1088
        %v1098 = vmul.f32 %v1075, %v1088
        %v1099 = vmul.f32 %v1076, %v1088
        %v1100 = vmul.f32 %v1077, %v1088
        %v1101 = vmul.f32 %v1078, %v1088
        %v1102 = vmul.f32 %v1079, %v1088
        %v1103 = vmul.f32 %v1080, %v1088
        %v1104 = vmul.f32 %v1081, %v1088
        %v1105 = vmul.f32 %v1082, %v1088
        %v1106 = vld [vmem:[%s4] sm:$0x1]
        %v1108 = vlaneseq
        %v1109 = vshrl.u32 %v1108, 7
        %v1110 = vsub.s32 0, %v1109
        %v1111 = vrot.slane %v1106, %v1110
        %v1113 = vadd.f32 %v1090, %v1111
        %v1114 = vadd.f32 %v1091, %v1111
        %v1115 = vadd.f32 %v1092, %v1111
        %v1116 = vadd.f32 %v1093, %v1111
        %v1117 = vadd.f32 %v1094, %v1111
        %v1118 = vadd.f32 %v1095, %v1111
        %v1119 = vadd.f32 %v1096, %v1111
        %v1120 = vadd.f32 %v1097, %v1111
        %v1121 = vadd.f32 %v1098, %v1111
        %v1122 = vadd.f32 %v1099, %v1111
        %v1123 = vadd.f32 %v1100, %v1111
        %v1124 = vadd.f32 %v1101, %v1111
        %v1125 = vadd.f32 %v1102, %v1111
        %v1126 = vadd.f32 %v1103, %v1111
        %v1127 = vadd.f32 %v1104, %v1111
        %v1128 = vadd.f32 %v1105, %v1111
        %1129 = vst [vmem:[#allocation4] sm:$0xff] %v1113
        %1130 = vst [vmem:[#allocation4 + $0x8] sm:$0xff] %v1114
        %1131 = vst [vmem:[#allocation4 + $0x10] sm:$0xff] %v1115
        %1132 = vst [vmem:[#allocation4 + $0x18] sm:$0xff] %v1116
        %1133 = vst [vmem:[#allocation4 + $0x20] sm:$0xff] %v1117
        %1134 = vst [vmem:[#allocation4 + $0x28] sm:$0xff] %v1118
        %1135 = vst [vmem:[#allocation4 + $0x30] sm:$0xff] %v1119
        %1136 = vst [vmem:[#allocation4 + $0x38] sm:$0xff] %v1120
        %1137 = vst [vmem:[#allocation4 + $0x40] sm:$0xff] %v1121
        %1138 = vst [vmem:[#allocation4 + $0x48] sm:$0xff] %v1122
        %1139 = vst [vmem:[#allocation4 + $0x50] sm:$0xff] %v1123
        %1140 = vst [vmem:[#allocation4 + $0x58] sm:$0xff] %v1124
        %1141 = vst [vmem:[#allocation4 + $0x60] sm:$0xff] %v1125
        %1142 = vst [vmem:[#allocation4 + $0x68] sm:$0xff] %v1126
        %1143 = vst [vmem:[#allocation4 + $0x70] sm:$0xff] %v1127
        %1144 = vst [vmem:[#allocation4 + $0x78] sm:$0xff] %v1128
        %v1145 = vld [vmem:[#allocation4] ss:$2 sm:$0xff]
        %s1146 = scalar_lea.vmem [#allocation4], 16
        %v1147 = vld [vmem:[%s1146] ss:$2 sm:$0xff]
        %s1148 = scalar_lea.vmem [#allocation4], 32
        %v1149 = vld [vmem:[%s1148] ss:$2 sm:$0xff]
        %s1150 = scalar_lea.vmem [#allocation4], 48
        %v1151 = vld [vmem:[%s1150] ss:$2 sm:$0xff]
        %s1152 = scalar_lea.vmem [#allocation4], 64
        %v1153 = vld [vmem:[%s1152] ss:$2 sm:$0xff]
        %s1154 = scalar_lea.vmem [#allocation4], 80
        %v1155 = vld [vmem:[%s1154] ss:$2 sm:$0xff]
        %s1156 = scalar_lea.vmem [#allocation4], 96
        %v1157 = vld [vmem:[%s1156] ss:$2 sm:$0xff]
        %s1158 = scalar_lea.vmem [#allocation4], 112
        %v1159 = vld [vmem:[%s1158] ss:$2 sm:$0xff]
        %s1160 = scalar_lea.vmem [#allocation4], 1
        %v1161 = vld [vmem:[%s1160] ss:$2 sm:$0xff]
        %s1162 = scalar_lea.vmem [#allocation4], 17
        %v1163 = vld [vmem:[%s1162] ss:$2 sm:$0xff]
        %s1164 = scalar_lea.vmem [#allocation4], 33
        %v1165 = vld [vmem:[%s1164] ss:$2 sm:$0xff]
        %s1166 = scalar_lea.vmem [#allocation4], 49
        %v1167 = vld [vmem:[%s1166] ss:$2 sm:$0xff]
        %s1168 = scalar_lea.vmem [#allocation4], 65
        %v1169 = vld [vmem:[%s1168] ss:$2 sm:$0xff]
        %s1170 = scalar_lea.vmem [#allocation4], 81
        %v1171 = vld [vmem:[%s1170] ss:$2 sm:$0xff]
        %s1172 = scalar_lea.vmem [#allocation4], 97
        %v1173 = vld [vmem:[%s1172] ss:$2 sm:$0xff]
        %s1174 = scalar_lea.vmem [#allocation4], 113
        %v1175 = vld [vmem:[%s1174] ss:$2 sm:$0xff]
        %v1176 = vmax.f32 %v1145, %v1161
        %v1177 = vmax.f32 %v1147, %v1163
        %v1178 = vmax.f32 %v1149, %v1165
        %v1179 = vmax.f32 %v1151, %v1167
        %v1180 = vmax.f32 %v1153, %v1169
        %v1181 = vmax.f32 %v1155, %v1171
        %v1182 = vmax.f32 %v1157, %v1173
        %v1183 = vmax.f32 %v1159, %v1175
        %1192 = vrot.lane.b32.xlu0 %v1176, 120
        %v1193 = vpop.permute.xlu0 %1192
        %1194 = vrot.lane.b32.xlu0 %v1177, 120
        %v1195 = vpop.permute.xlu0 %1194
        %1196 = vrot.lane.b32.xlu0 %v1178, 120
        %v1197 = vpop.permute.xlu0 %1196
        %1198 = vrot.lane.b32.xlu0 %v1179, 120
        %v1199 = vpop.permute.xlu0 %1198
        %1200 = vrot.lane.b32.xlu0 %v1180, 120
        %v1201 = vpop.permute.xlu0 %1200
        %1202 = vrot.lane.b32.xlu0 %v1181, 120
        %v1203 = vpop.permute.xlu0 %1202
        %1204 = vrot.lane.b32.xlu0 %v1182, 120
        %v1205 = vpop.permute.xlu0 %1204
        %1206 = vrot.lane.b32.xlu0 %v1183, 120
        %v1207 = vpop.permute.xlu0 %1206
        %v1216 = vmax.f32 %v1176, %v1193
        %v1217 = vmax.f32 %v1177, %v1195
        %v1218 = vmax.f32 %v1178, %v1197
        %v1219 = vmax.f32 %v1179, %v1199
        %v1220 = vmax.f32 %v1180, %v1201
        %v1221 = vmax.f32 %v1181, %v1203
        %v1222 = vmax.f32 %v1182, %v1205
        %v1223 = vmax.f32 %v1183, %v1207
        %v1224 = vld [vmem:[%s5] sm:$0xff]
        %v1225 = vld [vmem:[%s5 + $0x8] sm:$0xff]
        %v1226 = vld [vmem:[%s5 + $0x10] sm:$0xff]
        %v1227 = vld [vmem:[%s5 + $0x18] sm:$0xff]
        %v1228 = vld [vmem:[%s5 + $0x20] sm:$0xff]
        %v1229 = vld [vmem:[%s5 + $0x28] sm:$0xff]
        %v1230 = vld [vmem:[%s5 + $0x30] sm:$0xff]
        %v1231 = vld [vmem:[%s5 + $0x38] sm:$0xff]
        %v1232 = vld [vmem:[%s5 + $0x40] sm:$0xff]
        %v1233 = vld [vmem:[%s5 + $0x48] sm:$0xff]
        %v1234 = vld [vmem:[%s5 + $0x50] sm:$0xff]
        %v1235 = vld [vmem:[%s5 + $0x58] sm:$0xff]
        %v1236 = vld [vmem:[%s5 + $0x60] sm:$0xff]
        %v1237 = vld [vmem:[%s5 + $0x68] sm:$0xff]
        %v1238 = vld [vmem:[%s5 + $0x70] sm:$0xff]
        %vm1239 = vcmask 982016
        %v1241 = vsel %vm1239, %v1216, 0
        %v1244 = vsel %vm1239, %v1217, 0
        %v1247 = vsel %vm1239, %v1218, 0
        %v1250 = vsel %vm1239, %v1219, 0
        %v1253 = vsel %vm1239, %v1220, 0
        %v1256 = vsel %vm1239, %v1221, 0
        %v1259 = vsel %vm1239, %v1222, 0
        %v1262 = vsel %vm1239, %v1223, 0
        %1264 = vmatprep.subr.mxu0 0.0
        %1265 = vmatpush1.msra.mxu0 %v1224
        %1266 = vmatprep.subr.mxu0 0.0
        %1267 = vmatpush1.msra.mxu0 %v1225
        %1268 = vmatprep.subr.mxu0 0.0
        %1269 = vmatpush1.msra.mxu0 %v1226
        %1270 = vmatprep.subr.mxu0 0.0
        %1271 = vmatpush1.msra.mxu0 %v1227
        %1272 = vmatprep.subr.mxu0 0.0
        %1273 = vmatpush1.msra.mxu0 %v1228
        %1274 = vmatprep.subr.mxu0 0.0
        %1275 = vmatpush1.msra.mxu0 %v1229
        %1276 = vmatprep.subr.mxu0 0.0
        %1277 = vmatpush1.msra.mxu0 %v1230
        %1278 = vmatprep.subr.mxu0 0.0
        %1279 = vmatpush1.msra.mxu0 %v1231
        %1280 = vmatprep.subr.mxu0 0.0
        %1281 = vmatpush1.msra.mxu0 %v1232
        %1282 = vmatprep.subr.mxu0 0.0
        %1283 = vmatpush1.msra.mxu0 %v1233
        %1284 = vmatprep.subr.mxu0 0.0
        %1285 = vmatpush1.msra.mxu0 %v1234
        %1286 = vmatprep.subr.mxu0 0.0
        %1287 = vmatpush1.msra.mxu0 %v1235
        %1288 = vmatprep.subr.mxu0 0.0
        %1289 = vmatpush1.msra.mxu0 %v1236
        %1290 = vmatprep.subr.mxu0 0.0
        %1291 = vmatpush1.msra.mxu0 %v1237
        %1292 = vmatprep.subr.mxu0 0.0
        %1293 = vmatpush1.msra.mxu0 %v1238
        %1294 = vmatprep.subr.mxu0 0.0
        %1295 = vmatpush1.msra.mxu0 0.0
        %1296 = vmatprep.subr.mxu0 0.0
        %1297 = vmatpush1.msra.mxu0 0.0
        %1298 = vmatprep.subr.mxu0 0.0
        %1299 = vmatpush1.msra.mxu0 0.0
        %1300 = vmatprep.subr.mxu0 0.0
        %1301 = vmatpush1.msra.mxu0 0.0
        %1302 = vmatprep.subr.mxu0 0.0
        %1303 = vmatpush1.msra.mxu0 0.0
        %1304 = vmatprep.subr.mxu0 0.0
        %1305 = vmatpush1.msra.mxu0 0.0
        %1306 = vmatprep.subr.mxu0 0.0
        %1307 = vmatpush1.msra.mxu0 0.0
        %1308 = vmatprep.subr.mxu0 0.0
        %1309 = vmatpush1.msra.mxu0 0.0
        %1310 = vmatprep.subr.mxu0 0.0
        %1311 = vmatpush1.msra.mxu0 0.0
        %1312 = vmatprep.subr.mxu0 0.0
        %1313 = vmatpush1.msra.mxu0 0.0
        %1314 = vmatprep.subr.mxu0 0.0
        %1315 = vmatpush1.msra.mxu0 0.0
        %1316 = vmatprep.subr.mxu0 0.0
        %1317 = vmatpush1.msra.mxu0 0.0
        %1318 = vmatprep.subr.mxu0 0.0
        %1319 = vmatpush1.msra.mxu0 0.0
        %1320 = vmatprep.subr.mxu0 0.0
        %1321 = vmatpush1.msra.mxu0 0.0
        %1322 = vmatprep.subr.mxu0 0.0
        %1323 = vmatpush1.msra.mxu0 0.0
        %1324 = vmatprep.subr.mxu0 0.0
        %1325 = vmatpush1.msra.mxu0 0.0
        %1326 = vmatprep.subr.mxu0 0.0
        %1327 = vmatpush1.msra.mxu0 0.0
        %1328 = vmatprep.mubr.f32.mxu0 0.0
        %1329 = vmatmul.mubr.f32.gmra.mrb[0].mxu0 %v1241
        %v1330 = vpop.f32.mrb[0].mxu0
        %v1331 = vadd.f32 0.0, %v1330
        %v1332 = vpop.f32.mrb[0].mxu0
        %1333 = vmatprep.mubr.f32.mxu0 0.0
        %1334 = vmatmul.mubr.f32.gmra.mrb[0].mxu0 %v1244
        %v1335 = vpop.f32.mrb[0].mxu0
        %v1336 = vadd.f32 0.0, %v1335
        %v1337 = vpop.f32.mrb[0].mxu0
        %1338 = vmatprep.mubr.f32.mxu0 0.0
        %1339 = vmatmul.mubr.f32.gmra.mrb[0].mxu0 %v1247
        %v1340 = vpop.f32.mrb[0].mxu0
        %v1341 = vadd.f32 0.0, %v1340
        %v1342 = vpop.f32.mrb[0].mxu0
        %1343 = vmatprep.mubr.f32.mxu0 0.0
        %1344 = vmatmul.mubr.f32.gmra.mrb[0].mxu0 %v1250
        %v1345 = vpop.f32.mrb[0].mxu0
        %v1346 = vadd.f32 0.0, %v1345
        %v1347 = vpop.f32.mrb[0].mxu0
        %1348 = vmatprep.mubr.f32.mxu0 0.0
        %1349 = vmatmul.mubr.f32.gmra.mrb[0].mxu0 %v1253
        %v1350 = vpop.f32.mrb[0].mxu0
        %v1351 = vadd.f32 0.0, %v1350
        %v1352 = vpop.f32.mrb[0].mxu0
        %1353 = vmatprep.mubr.f32.mxu0 0.0
        %1354 = vmatmul.mubr.f32.gmra.mrb[0].mxu0 %v1256
        %v1355 = vpop.f32.mrb[0].mxu0
        %v1356 = vadd.f32 0.0, %v1355
        %v1357 = vpop.f32.mrb[0].mxu0
        %1358 = vmatprep.mubr.f32.mxu0 0.0
        %1359 = vmatmul.mubr.f32.gmra.mrb[0].mxu0 %v1259
        %v1360 = vpop.f32.mrb[0].mxu0
        %v1361 = vadd.f32 0.0, %v1360
        %v1362 = vpop.f32.mrb[0].mxu0
        %1363 = vmatprep.mubr.f32.mxu0 0.0
        %1364 = vmatmul.mubr.f32.gmra.mrb[0].mxu0 %v1262
        %v1365 = vpop.f32.mrb[0].mxu0
        %v1366 = vadd.f32 0.0, %v1365
        %v1367 = vpop.f32.mrb[0].mxu0
        %1368 = vdwg.mxu0
        %1369 = vst.msk [vmem:[#allocation3] sm:$0x1] %vm445, 0.0
        %1370 = vst.msk [vmem:[#allocation3 + $0x10] sm:$0x1] %vm445, 0.0
        %1371 = vst.msk [vmem:[#allocation3 + $0x20] sm:$0x1] %vm445, 0.0
        %1372 = vst.msk [vmem:[#allocation3 + $0x30] sm:$0x1] %vm445, 0.0
        %1373 = vst.msk [vmem:[#allocation3 + $0x40] sm:$0x1] %vm445, 0.0
        %1374 = vst.msk [vmem:[#allocation3 + $0x50] sm:$0x1] %vm445, 0.0
        %1375 = vst.msk [vmem:[#allocation3 + $0x60] sm:$0x1] %vm445, 0.0
        %1376 = vst.msk [vmem:[#allocation3 + $0x70] sm:$0x1] %vm445, 0.0
        %1377 = vst.msk [vmem:[#allocation3 + $0x9] sm:$0x1] %vm445, 0.0
        %1378 = vst.msk [vmem:[#allocation3 + $0x19] sm:$0x1] %vm445, 0.0
        %1379 = vst.msk [vmem:[#allocation3 + $0x29] sm:$0x1] %vm445, 0.0
        %1380 = vst.msk [vmem:[#allocation3 + $0x39] sm:$0x1] %vm445, 0.0
        %1381 = vst.msk [vmem:[#allocation3 + $0x49] sm:$0x1] %vm445, 0.0
        %1382 = vst.msk [vmem:[#allocation3 + $0x59] sm:$0x1] %vm445, 0.0
        %1383 = vst.msk [vmem:[#allocation3 + $0x69] sm:$0x1] %vm445, 0.0
        %1384 = vst.msk [vmem:[#allocation3 + $0x79] sm:$0x1] %vm445, 0.0
        %v1385 = vld [vmem:[%s6] sm:$0x1]
        %v1387 = vlaneseq
        %v1388 = vshrl.u32 %v1387, 7
        %v1389 = vsub.s32 0, %v1388
        %v1390 = vrot.slane %v1385, %v1389
        %v1392 = vadd.f32 %v1331, %v1390
        %v1393 = vadd.f32 %v1336, %v1390
        %v1394 = vadd.f32 %v1341, %v1390
        %v1395 = vadd.f32 %v1346, %v1390
        %v1396 = vadd.f32 %v1351, %v1390
        %v1397 = vadd.f32 %v1356, %v1390
        %v1398 = vadd.f32 %v1361, %v1390
        %v1399 = vadd.f32 %v1366, %v1390
        %1400 = vst.msk [vmem:[#allocation3 + $0x1] sm:$0xff] %vm478, %v1392
        %1401 = vst.msk [vmem:[#allocation3 + $0x11] sm:$0xff] %vm478, %v1393
        %1402 = vst.msk [vmem:[#allocation3 + $0x21] sm:$0xff] %vm478, %v1394
        %1403 = vst.msk [vmem:[#allocation3 + $0x31] sm:$0xff] %vm478, %v1395
        %1404 = vst.msk [vmem:[#allocation3 + $0x41] sm:$0xff] %vm478, %v1396
        %1405 = vst.msk [vmem:[#allocation3 + $0x51] sm:$0xff] %vm478, %v1397
        %1406 = vst.msk [vmem:[#allocation3 + $0x61] sm:$0xff] %vm478, %v1398
        %1407 = vst.msk [vmem:[#allocation3 + $0x71] sm:$0xff] %vm478, %v1399
        %v1408 = vld [vmem:[#allocation3] sm:$0xff]
        %v1409 = vld [vmem:[#allocation3 + $0x10] sm:$0xff]
        %v1410 = vld [vmem:[#allocation3 + $0x20] sm:$0xff]
        %v1411 = vld [vmem:[#allocation3 + $0x30] sm:$0xff]
        %v1412 = vld [vmem:[#allocation3 + $0x40] sm:$0xff]
        %v1413 = vld [vmem:[#allocation3 + $0x50] sm:$0xff]
        %v1414 = vld [vmem:[#allocation3 + $0x60] sm:$0xff]
        %v1415 = vld [vmem:[#allocation3 + $0x70] sm:$0xff]
        %v1416 = vpack.c.bf16 %v1409, %v1408
        %v1417 = vpack.c.bf16 %v1411, %v1410
        %v1418 = vpack.c.bf16 %v1413, %v1412
        %v1419 = vpack.c.bf16 %v1415, %v1414
        %v1420 = vld [vmem:[%s7] sm:$0xf]
        %v1421 = vld [vmem:[%s7 + $0x4] sm:$0xf]
        %v1422 = vld [vmem:[%s7 + $0x8] sm:$0xf]
        %v1423 = vld [vmem:[%s7 + $0xc] sm:$0xf]
        %v1424 = vld [vmem:[%s7 + $0x10] sm:$0xf]
        %v1425 = vld [vmem:[%s7 + $0x14] sm:$0xf]
        %v1426 = vld [vmem:[%s7 + $0x18] sm:$0xf]
        %v1427 = vld [vmem:[%s7 + $0x1c] sm:$0xf]
        %v1428 = vld [vmem:[#allocation3 + $0x1] sm:$0xff]
        %v1429 = vld [vmem:[#allocation3 + $0x11] sm:$0xff]
        %v1430 = vld [vmem:[#allocation3 + $0x21] sm:$0xff]
        %v1431 = vld [vmem:[#allocation3 + $0x31] sm:$0xff]
        %v1432 = vld [vmem:[#allocation3 + $0x41] sm:$0xff]
        %v1433 = vld [vmem:[#allocation3 + $0x51] sm:$0xff]
        %v1434 = vld [vmem:[#allocation3 + $0x61] sm:$0xff]
        %v1435 = vld [vmem:[#allocation3 + $0x71] sm:$0xff]
        %v1436 = vpack.c.bf16 %v1429, %v1428
        %v1437 = vpack.c.bf16 %v1431, %v1430
        %v1438 = vpack.c.bf16 %v1433, %v1432
        %v1439 = vpack.c.bf16 %v1435, %v1434
        %s1440 = scalar_lea.vmem %s7, 32
        %v1441 = vld [vmem:[%s1440] sm:$0xf]
        %v1442 = vld [vmem:[%s1440 + $0x4] sm:$0xf]
        %v1443 = vld [vmem:[%s1440 + $0x8] sm:$0xf]
        %v1444 = vld [vmem:[%s1440 + $0xc] sm:$0xf]
        %v1445 = vld [vmem:[%s1440 + $0x10] sm:$0xf]
        %v1446 = vld [vmem:[%s1440 + $0x14] sm:$0xf]
        %v1447 = vld [vmem:[%s1440 + $0x18] sm:$0xf]
        %v1448 = vld [vmem:[%s1440 + $0x1c] sm:$0xf]
        %v1457 = vunpack.c.l.b16 %v1441
        %v1458 = vunpack.c.l.b16 %v1442
        %v1459 = vunpack.c.l.b16 %v1443
        %v1460 = vunpack.c.l.b16 %v1444
        %v1461 = vunpack.c.l.b16 %v1445
        %v1462 = vunpack.c.l.b16 %v1446
        %v1463 = vunpack.c.l.b16 %v1447
        %v1464 = vunpack.c.l.b16 %v1448
        %v1465 = vpack.c.b16 %v1458, %v1457
        %v1466 = vpack.c.b16 %v1460, %v1459
        %v1467 = vpack.c.b16 %v1462, %v1461
        %v1468 = vpack.c.b16 %v1464, %v1463
        %v1474 = vsel %vm478, %v1436, 0
        %v1477 = vsel %vm478, %v1437, 0
        %v1480 = vsel %vm478, %v1438, 0
        %v1483 = vsel %vm478, %v1439, 0
        %1485 = vmatprep.subr.bf16.mxu0 0
        %1486 = vmatpush1.bf16.msra.mxu0 %v1465
        %1487 = vmatprep.subr.bf16.mxu0 0
        %1488 = vmatpush1.bf16.msra.mxu0 %v1466
        %1489 = vmatprep.subr.bf16.mxu0 0
        %1490 = vmatpush1.bf16.msra.mxu0 %v1467
        %1491 = vmatprep.subr.bf16.mxu0 0
        %1492 = vmatpush1.bf16.msra.mxu0 %v1468
        %1493 = vmatprep.subr.bf16.mxu0 0
        %1494 = vmatpush1.bf16.msra.mxu0 0
        %1495 = vmatprep.subr.bf16.mxu0 0
        %1496 = vmatpush1.bf16.msra.mxu0 0
        %1497 = vmatprep.subr.bf16.mxu0 0
        %1498 = vmatpush1.bf16.msra.mxu0 0
        %1499 = vmatprep.subr.bf16.mxu0 0
        %1500 = vmatpush1.bf16.msra.mxu0 0
        %1501 = vmatprep.subr.bf16.mxu0 0
        %1502 = vmatpush1.bf16.msra.mxu0 0
        %1503 = vmatprep.subr.bf16.mxu0 0
        %1504 = vmatpush1.bf16.msra.mxu0 0
        %1505 = vmatprep.subr.bf16.mxu0 0
        %1506 = vmatpush1.bf16.msra.mxu0 0
        %1507 = vmatprep.subr.bf16.mxu0 0
        %1508 = vmatpush1.bf16.msra.mxu0 0
        %1509 = vmatprep.subr.bf16.mxu0 0
        %1510 = vmatpush1.bf16.msra.mxu0 0
        %1511 = vmatprep.subr.bf16.mxu0 0
        %1512 = vmatpush1.bf16.msra.mxu0 0
        %1513 = vmatprep.subr.bf16.mxu0 0
        %1514 = vmatpush1.bf16.msra.mxu0 0
        %1515 = vmatprep.subr.bf16.mxu0 0
        %1516 = vmatpush1.bf16.msra.mxu0 0
        %1517 = vmatprep.mubr.bf16.mxu0 0
        %1518 = vmatmul.mubr.bf16.gmra.mrb[0].mxu0 %v1474
        %v1519 = vpop.f32.mrb[0].mxu0
        %v1520 = vadd.f32 0.0, %v1519
        %v1521 = vpop.f32.mrb[0].mxu0
        %v1522 = vpop.f32.mrb[0].mxu0
        %v1523 = vadd.f32 0.0, %v1522
        %v1524 = vpop.f32.mrb[0].mxu0
        %1525 = vmatprep.mubr.bf16.mxu0 0
        %1526 = vmatmul.mubr.bf16.gmra.mrb[0].mxu0 %v1477
        %v1527 = vpop.f32.mrb[0].mxu0
        %v1528 = vadd.f32 0.0, %v1527
        %v1529 = vpop.f32.mrb[0].mxu0
        %v1530 = vpop.f32.mrb[0].mxu0
        %v1531 = vadd.f32 0.0, %v1530
        %v1532 = vpop.f32.mrb[0].mxu0
        %1533 = vmatprep.mubr.bf16.mxu0 0
        %1534 = vmatmul.mubr.bf16.gmra.mrb[0].mxu0 %v1480
        %v1535 = vpop.f32.mrb[0].mxu0
        %v1536 = vadd.f32 0.0, %v1535
        %v1537 = vpop.f32.mrb[0].mxu0
        %v1538 = vpop.f32.mrb[0].mxu0
        %v1539 = vadd.f32 0.0, %v1538
        %v1540 = vpop.f32.mrb[0].mxu0
        %1541 = vmatprep.mubr.bf16.mxu0 0
        %1542 = vmatmul.mubr.bf16.gmra.mrb[0].mxu0 %v1483
        %v1543 = vpop.f32.mrb[0].mxu0
        %v1544 = vadd.f32 0.0, %v1543
        %v1545 = vpop.f32.mrb[0].mxu0
        %v1546 = vpop.f32.mrb[0].mxu0
        %v1547 = vadd.f32 0.0, %v1546
        %v1548 = vpop.f32.mrb[0].mxu0
        %1549 = vdwg.mxu0
        %v1558 = vunpack.c.l.b16 %v1420
        %v1559 = vunpack.c.l.b16 %v1421
        %v1560 = vunpack.c.l.b16 %v1422
        %v1561 = vunpack.c.l.b16 %v1423
        %v1562 = vunpack.c.l.b16 %v1424
        %v1563 = vunpack.c.l.b16 %v1425
        %v1564 = vunpack.c.l.b16 %v1426
        %v1565 = vunpack.c.l.b16 %v1427
        %v1566 = vpack.c.b16 %v1559, %v1558
        %v1567 = vpack.c.b16 %v1561, %v1560
        %v1568 = vpack.c.b16 %v1563, %v1562
        %v1569 = vpack.c.b16 %v1565, %v1564
        %v1575 = vsel %vm478, %v1416, 0
        %v1578 = vsel %vm478, %v1417, 0
        %v1581 = vsel %vm478, %v1418, 0
        %v1584 = vsel %vm478, %v1419, 0
        %1586 = vmatprep.subr.bf16.mxu0 0
        %1587 = vmatpush1.bf16.msra.mxu0 %v1566
        %1588 = vmatprep.subr.bf16.mxu0 0
        %1589 = vmatpush1.bf16.msra.mxu0 %v1567
        %1590 = vmatprep.subr.bf16.mxu0 0
        %1591 = vmatpush1.bf16.msra.mxu0 %v1568
        %1592 = vmatprep.subr.bf16.mxu0 0
        %1593 = vmatpush1.bf16.msra.mxu0 %v1569
        %1594 = vmatprep.subr.bf16.mxu0 0
        %1595 = vmatpush1.bf16.msra.mxu0 0
        %1596 = vmatprep.subr.bf16.mxu0 0
        %1597 = vmatpush1.bf16.msra.mxu0 0
        %1598 = vmatprep.subr.bf16.mxu0 0
        %1599 = vmatpush1.bf16.msra.mxu0 0
        %1600 = vmatprep.subr.bf16.mxu0 0
        %1601 = vmatpush1.bf16.msra.mxu0 0
        %1602 = vmatprep.subr.bf16.mxu0 0
        %1603 = vmatpush1.bf16.msra.mxu0 0
        %1604 = vmatprep.subr.bf16.mxu0 0
        %1605 = vmatpush1.bf16.msra.mxu0 0
        %1606 = vmatprep.subr.bf16.mxu0 0
        %1607 = vmatpush1.bf16.msra.mxu0 0
        %1608 = vmatprep.subr.bf16.mxu0 0
        %1609 = vmatpush1.bf16.msra.mxu0 0
        %1610 = vmatprep.subr.bf16.mxu0 0
        %1611 = vmatpush1.bf16.msra.mxu0 0
        %1612 = vmatprep.subr.bf16.mxu0 0
        %1613 = vmatpush1.bf16.msra.mxu0 0
        %1614 = vmatprep.subr.bf16.mxu0 0
        %1615 = vmatpush1.bf16.msra.mxu0 0
        %1616 = vmatprep.subr.bf16.mxu0 0
        %1617 = vmatpush1.bf16.msra.mxu0 0
        %1618 = vmatprep.mubr.bf16.mxu0 0
        %1619 = vmatmul.mubr.bf16.gmra.mrb[0].mxu0 %v1575
        %v1620 = vpop.f32.mrb[0].mxu0
        %v1621 = vadd.f32 %v1520, %v1620
        %v1622 = vpop.f32.mrb[0].mxu0
        %v1623 = vpop.f32.mrb[0].mxu0
        %v1624 = vadd.f32 %v1523, %v1623
        %v1625 = vpop.f32.mrb[0].mxu0
        %1626 = vmatprep.mubr.bf16.mxu0 0
        %1627 = vmatmul.mubr.bf16.gmra.mrb[0].mxu0 %v1578
        %v1628 = vpop.f32.mrb[0].mxu0
        %v1629 = vadd.f32 %v1528, %v1628
        %v1630 = vpop.f32.mrb[0].mxu0
        %v1631 = vpop.f32.mrb[0].mxu0
        %v1632 = vadd.f32 %v1531, %v1631
        %v1633 = vpop.f32.mrb[0].mxu0
        %1634 = vmatprep.mubr.bf16.mxu0 0
        %1635 = vmatmul.mubr.bf16.gmra.mrb[0].mxu0 %v1581
        %v1636 = vpop.f32.mrb[0].mxu0
        %v1637 = vadd.f32 %v1536, %v1636
        %v1638 = vpop.f32.mrb[0].mxu0
        %v1639 = vpop.f32.mrb[0].mxu0
        %v1640 = vadd.f32 %v1539, %v1639
        %v1641 = vpop.f32.mrb[0].mxu0
        %1642 = vmatprep.mubr.bf16.mxu0 0
        %1643 = vmatmul.mubr.bf16.gmra.mrb[0].mxu0 %v1584
        %v1644 = vpop.f32.mrb[0].mxu0
        %v1645 = vadd.f32 %v1544, %v1644
        %v1646 = vpop.f32.mrb[0].mxu0
        %v1647 = vpop.f32.mrb[0].mxu0
        %v1648 = vadd.f32 %v1547, %v1647
        %v1649 = vpop.f32.mrb[0].mxu0
        %1650 = vdwg.mxu0
        %v1651 = vld [vmem:[#allocation3 + $0x2] sm:$0xff]
        %v1652 = vld [vmem:[#allocation3 + $0x12] sm:$0xff]
        %v1653 = vld [vmem:[#allocation3 + $0x22] sm:$0xff]
        %v1654 = vld [vmem:[#allocation3 + $0x32] sm:$0xff]
        %v1655 = vld [vmem:[#allocation3 + $0x42] sm:$0xff]
        %v1656 = vld [vmem:[#allocation3 + $0x52] sm:$0xff]
        %v1657 = vld [vmem:[#allocation3 + $0x62] sm:$0xff]
        %v1658 = vld [vmem:[#allocation3 + $0x72] sm:$0xff]
        %v1659 = vpack.c.bf16 %v1652, %v1651
        %v1660 = vpack.c.bf16 %v1654, %v1653
        %v1661 = vpack.c.bf16 %v1656, %v1655
        %v1662 = vpack.c.bf16 %v1658, %v1657
        %s1663 = scalar_lea.vmem %s7, 64
        %v1664 = vld [vmem:[%s1663] sm:$0xf]
        %v1665 = vld [vmem:[%s1663 + $0x4] sm:$0xf]
        %v1666 = vld [vmem:[%s1663 + $0x8] sm:$0xf]
        %v1667 = vld [vmem:[%s1663 + $0xc] sm:$0xf]
        %v1668 = vld [vmem:[%s1663 + $0x10] sm:$0xf]
        %v1669 = vld [vmem:[%s1663 + $0x14] sm:$0xf]
        %v1670 = vld [vmem:[%s1663 + $0x18] sm:$0xf]
        %v1671 = vld [vmem:[%s1663 + $0x1c] sm:$0xf]
        %v1680 = vunpack.c.l.b16 %v1664
        %v1681 = vunpack.c.l.b16 %v1665
        %v1682 = vunpack.c.l.b16 %v1666
        %v1683 = vunpack.c.l.b16 %v1667
        %v1684 = vunpack.c.l.b16 %v1668
        %v1685 = vunpack.c.l.b16 %v1669
        %v1686 = vunpack.c.l.b16 %v1670
        %v1687 = vunpack.c.l.b16 %v1671
        %v1688 = vpack.c.b16 %v1681, %v1680
        %v1689 = vpack.c.b16 %v1683, %v1682
        %v1690 = vpack.c.b16 %v1685, %v1684
        %v1691 = vpack.c.b16 %v1687, %v1686
        %v1697 = vsel %vm478, %v1659, 0
        %v1700 = vsel %vm478, %v1660, 0
        %v1703 = vsel %vm478, %v1661, 0
        %v1706 = vsel %vm478, %v1662, 0
        %1708 = vmatprep.subr.bf16.mxu0 0
        %1709 = vmatpush1.bf16.msra.mxu0 %v1688
        %1710 = vmatprep.subr.bf16.mxu0 0
        %1711 = vmatpush1.bf16.msra.mxu0 %v1689
        %1712 = vmatprep.subr.bf16.mxu0 0
        %1713 = vmatpush1.bf16.msra.mxu0 %v1690
        %1714 = vmatprep.subr.bf16.mxu0 0
        %1715 = vmatpush1.bf16.msra.mxu0 %v1691
        %1716 = vmatprep.subr.bf16.mxu0 0
        %1717 = vmatpush1.bf16.msra.mxu0 0
        %1718 = vmatprep.subr.bf16.mxu0 0
        %1719 = vmatpush1.bf16.msra.mxu0 0
        %1720 = vmatprep.subr.bf16.mxu0 0
        %1721 = vmatpush1.bf16.msra.mxu0 0
        %1722 = vmatprep.subr.bf16.mxu0 0
        %1723 = vmatpush1.bf16.msra.mxu0 0
        %1724 = vmatprep.subr.bf16.mxu0 0
        %1725 = vmatpush1.bf16.msra.mxu0 0
        %1726 = vmatprep.subr.bf16.mxu0 0
        %1727 = vmatpush1.bf16.msra.mxu0 0
        %1728 = vmatprep.subr.bf16.mxu0 0
        %1729 = vmatpush1.bf16.msra.mxu0 0
        %1730 = vmatprep.subr.bf16.mxu0 0
        %1731 = vmatpush1.bf16.msra.mxu0 0
        %1732 = vmatprep.subr.bf16.mxu0 0
        %1733 = vmatpush1.bf16.msra.mxu0 0
        %1734 = vmatprep.subr.bf16.mxu0 0
        %1735 = vmatpush1.bf16.msra.mxu0 0
        %1736 = vmatprep.subr.bf16.mxu0 0
        %1737 = vmatpush1.bf16.msra.mxu0 0
        %1738 = vmatprep.subr.bf16.mxu0 0
        %1739 = vmatpush1.bf16.msra.mxu0 0
        %1740 = vmatprep.mubr.bf16.mxu0 0
        %1741 = vmatmul.mubr.bf16.gmra.mrb[0].mxu0 %v1697
        %v1742 = vpop.f32.mrb[0].mxu0
        %v1743 = vadd.f32 0.0, %v1742
        %v1744 = vpop.f32.mrb[0].mxu0
        %v1745 = vpop.f32.mrb[0].mxu0
        %v1746 = vadd.f32 0.0, %v1745
        %v1747 = vpop.f32.mrb[0].mxu0
        %1748 = vmatprep.mubr.bf16.mxu0 0
        %1749 = vmatmul.mubr.bf16.gmra.mrb[0].mxu0 %v1700
        %v1750 = vpop.f32.mrb[0].mxu0
        %v1751 = vadd.f32 0.0, %v1750
        %v1752 = vpop.f32.mrb[0].mxu0
        %v1753 = vpop.f32.mrb[0].mxu0
        %v1754 = vadd.f32 0.0, %v1753
        %v1755 = vpop.f32.mrb[0].mxu0
        %1756 = vmatprep.mubr.bf16.mxu0 0
        %1757 = vmatmul.mubr.bf16.gmra.mrb[0].mxu0 %v1703
        %v1758 = vpop.f32.mrb[0].mxu0
        %v1759 = vadd.f32 0.0, %v1758
        %v1760 = vpop.f32.mrb[0].mxu0
        %v1761 = vpop.f32.mrb[0].mxu0
        %v1762 = vadd.f32 0.0, %v1761
        %v1763 = vpop.f32.mrb[0].mxu0
        %1764 = vmatprep.mubr.bf16.mxu0 0
        %1765 = vmatmul.mubr.bf16.gmra.mrb[0].mxu0 %v1706
        %v1766 = vpop.f32.mrb[0].mxu0
        %v1767 = vadd.f32 0.0, %v1766
        %v1768 = vpop.f32.mrb[0].mxu0
        %v1769 = vpop.f32.mrb[0].mxu0
        %v1770 = vadd.f32 0.0, %v1769
        %v1771 = vpop.f32.mrb[0].mxu0
        %1772 = vdwg.mxu0
        %v1773 = vadd.f32 %v1621, %v1743
        %v1774 = vadd.f32 %v1624, %v1746
        %v1775 = vadd.f32 %v1629, %v1751
        %v1776 = vadd.f32 %v1632, %v1754
        %v1777 = vadd.f32 %v1637, %v1759
        %v1778 = vadd.f32 %v1640, %v1762
        %v1779 = vadd.f32 %v1645, %v1767
        %v1780 = vadd.f32 %v1648, %v1770
        %v1781 = vld [vmem:[%s8] sm:$0x1]
        %v1783 = vlaneseq
        %v1784 = vshrl.u32 %v1783, 7
        %v1785 = vsub.s32 0, %v1784
        %v1786 = vrot.slane %v1781, %v1785
        %v1788 = vadd.f32 %v1773, %v1786
        %v1789 = vadd.f32 %v1774, %v1786
        %v1790 = vadd.f32 %v1775, %v1786
        %v1791 = vadd.f32 %v1776, %v1786
        %v1792 = vadd.f32 %v1777, %v1786
        %v1793 = vadd.f32 %v1778, %v1786
        %v1794 = vadd.f32 %v1779, %v1786
        %v1795 = vadd.f32 %v1780, %v1786
        %v1796 = vmax.f32 %v1788, 0.0
        %v1797 = vmax.f32 %v1789, 0.0
        %v1798 = vmax.f32 %v1790, 0.0
        %v1799 = vmax.f32 %v1791, 0.0
        %v1800 = vmax.f32 %v1792, 0.0
        %v1801 = vmax.f32 %v1793, 0.0
        %v1802 = vmax.f32 %v1794, 0.0
        %v1803 = vmax.f32 %v1795, 0.0
        %v1804 = vld [vmem:[%s9] sm:$0xff]
        %v1805 = vld [vmem:[%s9 + $0x8] sm:$0xff]
        %v1806 = vld [vmem:[%s9 + $0x10] sm:$0xff]
        %v1807 = vld [vmem:[%s9 + $0x18] sm:$0xff]
        %v1808 = vld [vmem:[%s9 + $0x20] sm:$0xff]
        %v1809 = vld [vmem:[%s9 + $0x28] sm:$0xff]
        %v1810 = vld [vmem:[%s9 + $0x30] sm:$0xff]
        %v1811 = vld [vmem:[%s9 + $0x38] sm:$0xff]
        %v1812 = vld [vmem:[%s10] sm:$0x1]
        %v1814 = vlaneseq
        %v1815 = vshrl.u32 %v1814, 7
        %v1816 = vsub.s32 0, %v1815
        %v1817 = vrot.slane %v1812, %v1816
        %v1820 = vsel %vm478, %v1331, 0
        %v1823 = vsel %vm478, %v1336, 0
        %v1826 = vsel %vm478, %v1341, 0
        %v1829 = vsel %vm478, %v1346, 0
        %v1832 = vsel %vm478, %v1351, 0
        %v1835 = vsel %vm478, %v1356, 0
        %v1838 = vsel %vm478, %v1361, 0
        %v1841 = vsel %vm478, %v1366, 0
        %1843 = vmatprep.subr.mxu0 0.0
        %1844 = vmatpush1.msra.mxu0 %v1804
        %1845 = vmatprep.subr.mxu0 0.0
        %1846 = vmatpush1.msra.mxu0 %v1805
        %1847 = vmatprep.subr.mxu0 0.0
        %1848 = vmatpush1.msra.mxu0 %v1806
        %1849 = vmatprep.subr.mxu0 0.0
        %1850 = vmatpush1.msra.mxu0 %v1807
        %1851 = vmatprep.subr.mxu0 0.0
        %1852 = vmatpush1.msra.mxu0 %v1808
        %1853 = vmatprep.subr.mxu0 0.0
        %1854 = vmatpush1.msra.mxu0 %v1809
        %1855 = vmatprep.subr.mxu0 0.0
        %1856 = vmatpush1.msra.mxu0 %v1810
        %1857 = vmatprep.subr.mxu0 0.0
        %1858 = vmatpush1.msra.mxu0 %v1811
        %1859 = vmatprep.subr.mxu0 0.0
        %1860 = vmatpush1.msra.mxu0 0.0
        %1861 = vmatprep.subr.mxu0 0.0
        %1862 = vmatpush1.msra.mxu0 0.0
        %1863 = vmatprep.subr.mxu0 0.0
        %1864 = vmatpush1.msra.mxu0 0.0
        %1865 = vmatprep.subr.mxu0 0.0
        %1866 = vmatpush1.msra.mxu0 0.0
        %1867 = vmatprep.subr.mxu0 0.0
        %1868 = vmatpush1.msra.mxu0 0.0
        %1869 = vmatprep.subr.mxu0 0.0
        %1870 = vmatpush1.msra.mxu0 0.0
        %1871 = vmatprep.subr.mxu0 0.0
        %1872 = vmatpush1.msra.mxu0 0.0
        %1873 = vmatprep.subr.mxu0 0.0
        %1874 = vmatpush1.msra.mxu0 0.0
        %1875 = vmatprep.subr.mxu0 0.0
        %1876 = vmatpush1.msra.mxu0 0.0
        %1877 = vmatprep.subr.mxu0 0.0
        %1878 = vmatpush1.msra.mxu0 0.0
        %1879 = vmatprep.subr.mxu0 0.0
        %1880 = vmatpush1.msra.mxu0 0.0
        %1881 = vmatprep.subr.mxu0 0.0
        %1882 = vmatpush1.msra.mxu0 0.0
        %1883 = vmatprep.subr.mxu0 0.0
        %1884 = vmatpush1.msra.mxu0 0.0
        %1885 = vmatprep.subr.mxu0 0.0
        %1886 = vmatpush1.msra.mxu0 0.0
        %1887 = vmatprep.subr.mxu0 0.0
        %1888 = vmatpush1.msra.mxu0 0.0
        %1889 = vmatprep.subr.mxu0 0.0
        %1890 = vmatpush1.msra.mxu0 0.0
        %1891 = vmatprep.subr.mxu0 0.0
        %1892 = vmatpush1.msra.mxu0 0.0
        %1893 = vmatprep.subr.mxu0 0.0
        %1894 = vmatpush1.msra.mxu0 0.0
        %1895 = vmatprep.subr.mxu0 0.0
        %1896 = vmatpush1.msra.mxu0 0.0
        %1897 = vmatprep.subr.mxu0 0.0
        %1898 = vmatpush1.msra.mxu0 0.0
        %1899 = vmatprep.subr.mxu0 0.0
        %1900 = vmatpush1.msra.mxu0 0.0
        %1901 = vmatprep.subr.mxu0 0.0
        %1902 = vmatpush1.msra.mxu0 0.0
        %1903 = vmatprep.subr.mxu0 0.0
        %1904 = vmatpush1.msra.mxu0 0.0
        %1905 = vmatprep.subr.mxu0 0.0
        %1906 = vmatpush1.msra.mxu0 0.0
        %1907 = vmatprep.mubr.f32.mxu0 0.0
        %1908 = vmatmul.mubr.f32.gmra.mrb[0].mxu0 %v1820
        %v1909 = vpop.f32.mrb[0].mxu0
        %v1910 = vadd.f32 %v1817, %v1909
        %v1911 = vpop.f32.mrb[0].mxu0
        %1912 = vmatprep.mubr.f32.mxu0 0.0
        %1913 = vmatmul.mubr.f32.gmra.mrb[0].mxu0 %v1823
        %v1914 = vpop.f32.mrb[0].mxu0
        %v1915 = vadd.f32 %v1817, %v1914
        %v1916 = vpop.f32.mrb[0].mxu0
        %1917 = vmatprep.mubr.f32.mxu0 0.0
        %1918 = vmatmul.mubr.f32.gmra.mrb[0].mxu0 %v1826
        %v1919 = vpop.f32.mrb[0].mxu0
        %v1920 = vadd.f32 %v1817, %v1919
        %v1921 = vpop.f32.mrb[0].mxu0
        %1922 = vmatprep.mubr.f32.mxu0 0.0
        %1923 = vmatmul.mubr.f32.gmra.mrb[0].mxu0 %v1829
        %v1924 = vpop.f32.mrb[0].mxu0
        %v1925 = vadd.f32 %v1817, %v1924
        %v1926 = vpop.f32.mrb[0].mxu0
        %1927 = vmatprep.mubr.f32.mxu0 0.0
        %1928 = vmatmul.mubr.f32.gmra.mrb[0].mxu0 %v1832
        %v1929 = vpop.f32.mrb[0].mxu0
        %v1930 = vadd.f32 %v1817, %v1929
        %v1931 = vpop.f32.mrb[0].mxu0
        %1932 = vmatprep.mubr.f32.mxu0 0.0
        %1933 = vmatmul.mubr.f32.gmra.mrb[0].mxu0 %v1835
        %v1934 = vpop.f32.mrb[0].mxu0
        %v1935 = vadd.f32 %v1817, %v1934
        %v1936 = vpop.f32.mrb[0].mxu0
        %1937 = vmatprep.mubr.f32.mxu0 0.0
        %1938 = vmatmul.mubr.f32.gmra.mrb[0].mxu0 %v1838
        %v1939 = vpop.f32.mrb[0].mxu0
        %v1940 = vadd.f32 %v1817, %v1939
        %v1941 = vpop.f32.mrb[0].mxu0
        %1942 = vmatprep.mubr.f32.mxu0 0.0
        %1943 = vmatmul.mubr.f32.gmra.mrb[0].mxu0 %v1841
        %v1944 = vpop.f32.mrb[0].mxu0
        %v1945 = vadd.f32 %v1817, %v1944
        %v1946 = vpop.f32.mrb[0].mxu0
        %1947 = vdwg.mxu0
        %v1948 = vadd.f32 %v1796, %v1910
        %v1949 = vadd.f32 %v1797, %v1915
        %v1950 = vadd.f32 %v1798, %v1920
        %v1951 = vadd.f32 %v1799, %v1925
        %v1952 = vadd.f32 %v1800, %v1930
        %v1953 = vadd.f32 %v1801, %v1935
        %v1954 = vadd.f32 %v1802, %v1940
        %v1955 = vadd.f32 %v1803, %v1945
        %v1956 = vmax.f32 %v1948, 0.0
        %v1957 = vmax.f32 %v1949, 0.0
        %v1958 = vmax.f32 %v1950, 0.0
        %v1959 = vmax.f32 %v1951, 0.0
        %v1960 = vmax.f32 %v1952, 0.0
        %v1961 = vmax.f32 %v1953, 0.0
        %v1962 = vmax.f32 %v1954, 0.0
        %v1963 = vmax.f32 %v1955, 0.0
        %v1964 = vmin.f32 %v1956, 6.0
        %v1965 = vmin.f32 %v1957, 6.0
        %v1966 = vmin.f32 %v1958, 6.0
        %v1967 = vmin.f32 %v1959, 6.0
        %v1968 = vmin.f32 %v1960, 6.0
        %v1969 = vmin.f32 %v1961, 6.0
        %v1970 = vmin.f32 %v1962, 6.0
        %v1971 = vmin.f32 %v1963, 6.0
        %v1972 = vrot.slane %v1964, 4
        %v1973 = vadd.f32 %v1964, %v1972
        %v1974 = vrot.slane %v1973, 2
        %v1975 = vadd.f32 %v1973, %v1974
        %v1976 = vrot.slane %v1975, 1
        %v1977 = vadd.f32 %v1975, %v1976
        %v1978 = vrot.slane %v1965, 4
        %v1979 = vadd.f32 %v1965, %v1978
        %v1980 = vrot.slane %v1979, 2
        %v1981 = vadd.f32 %v1979, %v1980
        %v1982 = vrot.slane %v1981, 1
        %v1983 = vadd.f32 %v1981, %v1982
        %v1984 = vrot.slane %v1966, 4
        %v1985 = vadd.f32 %v1966, %v1984
        %v1986 = vrot.slane %v1985, 2
        %v1987 = vadd.f32 %v1985, %v1986
        %v1988 = vrot.slane %v1987, 1
        %v1989 = vadd.f32 %v1987, %v1988
        %v1990 = vrot.slane %v1967, 4
        %v1991 = vadd.f32 %v1967, %v1990
        %v1992 = vrot.slane %v1991, 2
        %v1993 = vadd.f32 %v1991, %v1992
        %v1994 = vrot.slane %v1993, 1
        %v1995 = vadd.f32 %v1993, %v1994
        %v1996 = vrot.slane %v1968, 4
        %v1997 = vadd.f32 %v1968, %v1996
        %v1998 = vrot.slane %v1997, 2
        %v1999 = vadd.f32 %v1997, %v1998
        %v2000 = vrot.slane %v1999, 1
        %v2001 = vadd.f32 %v1999, %v2000
        %v2002 = vrot.slane %v1969, 4
        %v2003 = vadd.f32 %v1969, %v2002
        %v2004 = vrot.slane %v2003, 2
        %v2005 = vadd.f32 %v2003, %v2004
        %v2006 = vrot.slane %v2005, 1
        %v2007 = vadd.f32 %v2005, %v2006
        %v2008 = vrot.slane %v1970, 4
        %v2009 = vadd.f32 %v1970, %v2008
        %v2010 = vrot.slane %v2009, 2
        %v2011 = vadd.f32 %v2009, %v2010
        %v2012 = vrot.slane %v2011, 1
        %v2013 = vadd.f32 %v2011, %v2012
        %v2014 = vrot.slane %v1971, 4
        %v2015 = vadd.f32 %v1971, %v2014
        %v2016 = vrot.slane %v2015, 2
        %v2017 = vadd.f32 %v2015, %v2016
        %v2018 = vrot.slane %v2017, 1
        %v2019 = vadd.f32 %v2017, %v2018
        %v2020 = vld [vmem:[%s11] sm:$0xff]
        %v2021 = vld [vmem:[%s11 + $0x8] sm:$0xff]
        %v2022 = vld [vmem:[%s11 + $0x10] sm:$0xff]
        %v2023 = vld [vmem:[%s11 + $0x18] sm:$0xff]
        %v2024 = vld [vmem:[%s11 + $0x20] sm:$0xff]
        %v2025 = vld [vmem:[%s11 + $0x28] sm:$0xff]
        %v2026 = vld [vmem:[%s11 + $0x30] sm:$0xff]
        %v2027 = vld [vmem:[%s11 + $0x38] sm:$0xff]
        %v2028 = vld [vmem:[%s11 + $0x40] sm:$0xff]
        %v2029 = vld [vmem:[%s11 + $0x48] sm:$0xff]
        %v2030 = vld [vmem:[%s11 + $0x50] sm:$0xff]
        %v2031 = vld [vmem:[%s11 + $0x58] sm:$0xff]
        %v2032 = vld [vmem:[%s11 + $0x60] sm:$0xff]
        %v2033 = vld [vmem:[%s11 + $0x68] sm:$0xff]
        %v2034 = vld [vmem:[%s11 + $0x70] sm:$0xff]
        %v2035 = vld [vmem:[%s11 + $0x78] sm:$0xff]
        %v2036 = vld [vmem:[%s12] sm:$0x1]
        %v2038 = vlaneseq
        %v2039 = vshrl.u32 %v2038, 7
        %v2040 = vsub.s32 0, %v2039
        %v2041 = vrot.slane %v2036, %v2040
        %vm2051 = vcmask 1041409
        %v2052 = vsel %vm2051, %v1983, %v1977
        %vm2053 = vcmask 1042434
        %v2054 = vsel %vm2053, %v1989, %v2052
        %vm2055 = vcmask 1043459
        %v2056 = vsel %vm2055, %v1995, %v2054
        %vm2057 = vcmask 1044484
        %v2058 = vsel %vm2057, %v2001, %v2056
        %vm2059 = vcmask 1045509
        %v2060 = vsel %vm2059, %v2007, %v2058
        %vm2061 = vcmask 1046534
        %v2062 = vsel %vm2061, %v2013, %v2060
        %vm2063 = vcmask 1047559
        %v2064 = vsel %vm2063, %v2019, %v2062
        %2066 = vmatprep.subr.mxu0 0.0
        %2067 = vmatpush1.msra.mxu0 %v2020
        %2068 = vmatprep.subr.mxu0 0.0
        %2069 = vmatpush1.msra.mxu0 %v2021
        %2070 = vmatprep.subr.mxu0 0.0
        %2071 = vmatpush1.msra.mxu0 %v2022
        %2072 = vmatprep.subr.mxu0 0.0
        %2073 = vmatpush1.msra.mxu0 %v2023
        %2074 = vmatprep.subr.mxu0 0.0
        %2075 = vmatpush1.msra.mxu0 %v2024
        %2076 = vmatprep.subr.mxu0 0.0
        %2077 = vmatpush1.msra.mxu0 %v2025
        %2078 = vmatprep.subr.mxu0 0.0
        %2079 = vmatpush1.msra.mxu0 %v2026
        %2080 = vmatprep.subr.mxu0 0.0
        %2081 = vmatpush1.msra.mxu0 %v2027
        %2082 = vmatprep.subr.mxu0 0.0
        %2083 = vmatpush1.msra.mxu0 %v2028
        %2084 = vmatprep.subr.mxu0 0.0
        %2085 = vmatpush1.msra.mxu0 %v2029
        %2086 = vmatprep.subr.mxu0 0.0
        %2087 = vmatpush1.msra.mxu0 %v2030
        %2088 = vmatprep.subr.mxu0 0.0
        %2089 = vmatpush1.msra.mxu0 %v2031
        %2090 = vmatprep.subr.mxu0 0.0
        %2091 = vmatpush1.msra.mxu0 %v2032
        %2092 = vmatprep.subr.mxu0 0.0
        %2093 = vmatpush1.msra.mxu0 %v2033
        %2094 = vmatprep.subr.mxu0 0.0
        %2095 = vmatpush1.msra.mxu0 %v2034
        %2096 = vmatprep.subr.mxu0 0.0
        %2097 = vmatpush1.msra.mxu0 %v2035
        %2098 = vmatprep.subr.mxu0 0.0
        %2099 = vmatpush1.msra.mxu0 0.0
        %2100 = vmatprep.subr.mxu0 0.0
        %2101 = vmatpush1.msra.mxu0 0.0
        %2102 = vmatprep.subr.mxu0 0.0
        %2103 = vmatpush1.msra.mxu0 0.0
        %2104 = vmatprep.subr.mxu0 0.0
        %2105 = vmatpush1.msra.mxu0 0.0
        %2106 = vmatprep.subr.mxu0 0.0
        %2107 = vmatpush1.msra.mxu0 0.0
        %2108 = vmatprep.subr.mxu0 0.0
        %2109 = vmatpush1.msra.mxu0 0.0
        %2110 = vmatprep.subr.mxu0 0.0
        %2111 = vmatpush1.msra.mxu0 0.0
        %2112 = vmatprep.subr.mxu0 0.0
        %2113 = vmatpush1.msra.mxu0 0.0
        %2114 = vmatprep.subr.mxu0 0.0
        %2115 = vmatpush1.msra.mxu0 0.0
        %2116 = vmatprep.subr.mxu0 0.0
        %2117 = vmatpush1.msra.mxu0 0.0
        %2118 = vmatprep.subr.mxu0 0.0
        %2119 = vmatpush1.msra.mxu0 0.0
        %2120 = vmatprep.subr.mxu0 0.0
        %2121 = vmatpush1.msra.mxu0 0.0
        %2122 = vmatprep.subr.mxu0 0.0
        %2123 = vmatpush1.msra.mxu0 0.0
        %2124 = vmatprep.subr.mxu0 0.0
        %2125 = vmatpush1.msra.mxu0 0.0
        %2126 = vmatprep.subr.mxu0 0.0
        %2127 = vmatpush1.msra.mxu0 0.0
        %2128 = vmatprep.subr.mxu0 0.0
        %2129 = vmatpush1.msra.mxu0 0.0
        %2130 = vmatprep.mubr.f32.mxu0 0.0
        %2131 = vmatmul.mubr.f32.gmra.mrb[0].mxu0 %v2064
        %v2132 = vpop.f32.mrb[0].mxu0
        %v2133 = vadd.f32 %v2041, %v2132
        %v2134 = vpop.f32.mrb[0].mxu0
        %2135 = vdwg.mxu0
        %vm2136 = vcmask 80896
        %2137 = vst.msk [vmem:[%s436] sm:$0xff] %vm2136, %v2133
        %s2138 = sand.u32 %s313, 1
        %s2139 = scalar_lea.sflag [#allocation6], %s2138
        %s2140 = sand.u32 %s313, 1
        %s2141 = smul.addr %s2140, 8
        %s2142 = scalar_lea.vmem [#allocation5], %s2141
        // Predicated region
        $region73: #{plain_network_forward.1} parent=71 // pred_check
          %p2143 = pneg %p323
        $region74: #{plain_network_forward.1} parent=71 // pred_check_branch
          %2145 = sbr.rel (%p2143) target = $region76
        $region75: #{plain_network_forward.1} parent=71 // pred_region
          %s2147 = ssub.s32 128, 128
          %2148 = vsyncadd %s2139, %s2147
          %s2149 = smul.addr %s27, 128
          %s2150 = scalar_lea.hbm %s13, %s2149
          %s2152 = sshll.u32 %s2142, 4
          %s2153 = int_to_ptr.vmem [resolvable:$true] %s2152
          %2155 = dma.vmem_to_hbm [thread:$0]  %s2153, 128, %s2150, %s2139
        $region76: #{plain_network_forward.1} parent=71 // pred_fallthru
          _
      $region72: #{plain_network_forward.1} parent=5 // pred_fallthru
        _
      %p2156 = scmp.le.s32.totalorder 2, %s22
      // Predicated region
      $region77: #{plain_network_forward.1} parent=5 // pred_check
        %p2157 = pneg %p2156
      $region78: #{plain_network_forward.1} parent=5 // pred_check_branch
        %2159 = sbr.rel (%p2157) target = $region80
      $region79: #{plain_network_forward.1} parent=5 // pred_region
        %s2160 = ssub.s32 %s22, 2
        // Predicated region
        $region81: #{plain_network_forward.1} parent=79 // pred_check
          %p2161 = pneg %p329
        $region82: #{plain_network_forward.1} parent=79 // pred_check_branch
          %2163 = sbr.rel (%p2161) target = $region84
        $region83: #{plain_network_forward.1} parent=79 // pred_region
          %s2164 = sand.u32 %s314, 1
          %s2165 = scalar_lea.sflag [#allocation6], %s2164
          %s2166 = sand.u32 %s314, 1
          %s2167 = smul.addr %s2166, 8
          %s2168 = scalar_lea.vmem [#allocation5], %s2167
          %2169 = dma.done %s2165, 128
        $region84: #{plain_network_forward.1} parent=79 // pred_fallthru
          _
      $region80: #{plain_network_forward.1} parent=5 // pred_fallthru
        _
    $region6: #{plain_network_forward.1} parent=1 // loop_footer
      %s26 = sadd.s32 1, %s22
    $region7: #{plain_network_forward.1} parent=1 // loop_footer_branch
      %21 = sbr.rel target = $region3
    $region8: #{plain_network_forward.1} parent=1 // loop_exit
      _
    %2170 = vsyncpa [#allocation6], 1
    %s2171 = scalar_lea.sflag [#allocation6], 1
    %2172 = vsyncpa %s2171, 1

</llo_original>
